<compile_context>
chip_gen: v5e
topology: v5e:2x2
jax: 0.10.0
libtpu: 0.0.40
codegen_flags: <defaults>
</compile_context>

<pallas_src>
import functools

import jax
import jax.numpy as jnp
from jax.experimental import pallas as pl
from jax.experimental.pallas import tpu as pltpu


def _cdiv(a, b):
    return -(-a // b)


def _round8(a):
    return 8 * _cdiv(a, 8)


def _leaky(x, slope):
    return jnp.where(x >= 0, x, slope * x)


def resblock_kernel(xl_ref, xc_ref, xr_ref, w1_ref, b1_ref, w2_ref, b2_ref,
                    o_ref, xs_ref, wk_ref, *,
                    K, dils, Tt, Hb, Ha, p2, T_true, slope, mm_dtype, fold):
    """All branches fused: x <- x + conv1(LReLU(conv_d(LReLU(x)))) per dilation."""
    f32 = jnp.float32
    t = pl.program_id(1)
    n_t = pl.num_programs(1)
    C = xc_ref.shape[-1]
    S = Tt + 2 * Hb
    B = len(dils)

    # ---- assemble the x slab [left halo | centre | right halo]; every store
    # starts at a multiple of 8 rows.  Halo rows past the sequence ends are
    # zeroed (== conv 'same' zero padding, legal before the activation since
    # LeakyReLU(0) == 0); rows in [T_true, T_pad) are already zero from jnp.pad.
    xs_ref[0:Hb, :] = jnp.where(t > 0, xl_ref[0].astype(f32), 0.0)
    xs_ref[Hb:Hb + Tt, :] = xc_ref[0].astype(f32)
    xs_ref[Hb + Tt:S, :] = jnp.where(t < n_t - 1, xr_ref[0].astype(f32), 0.0)

    # Row validity of the slab w.r.t. the real sequence, hoisted out of the
    # branch loop.  Slab row i <-> global time row t*Tt - Hb + i.
    g = t * Tt - Hb + jax.lax.broadcasted_iota(jnp.int32, (S, 1), 0)
    valid = (g >= 0) & (g < T_true)                                # (S, 1)

    # Remaining halo needed by branches after b (per-branch halos 8-aligned).
    Ra = [sum(Ha[b + 1:]) for b in range(B)]

    for b in range(B):                                             # static unroll
        d = dils[b]
        p1 = d * (K - 1) // 2
        o_in = Hb - (Ra[b] + Ha[b])          # live-input start   (mult of 8)
        L_in = Tt + 2 * (Ra[b] + Ha[b])      #                    (mult of 8)
        o_out = Hb - Ra[b]                   # branch-output start (mult of 8)
        L_out = Tt + 2 * Ra[b]               #                    (mult of 8)
        Lh = L_out + 2 * p2                  # rows of h (conv-1 output) needed
        s0 = o_out - p2 - p1                 # slab row feeding tap k=0 of h row 0

        # Stage LeakyReLU(x) in MXU dtype once (aligned store); conv taps below
        # are small static ref loads instead of slices of a materialized value.
        wk_ref[o_in:o_in + L_in, :] = _leaky(
            xs_ref[o_in:o_in + L_in, :], slope).astype(mm_dtype)

        # ---- conv 1 (dilation d), bias-initialised f32 accumulator.
        acc1 = jnp.broadcast_to(b1_ref[b].astype(f32), (Lh, C))
        if fold:
            lhs = jnp.concatenate(
                [wk_ref[s0 + k * d:s0 + k * d + Lh, :] for k in range(K)], axis=-1)
            acc1 = acc1 + jnp.dot(lhs, w1_ref[b], preferred_element_type=f32)
        else:
            for k in range(K):
                acc1 = acc1 + jnp.dot(wk_ref[s0 + k * d:s0 + k * d + Lh, :],
                                      w1_ref[b, k], preferred_element_type=f32)

        # Zero h rows outside the real sequence (conv 2's 'same' padding of h).
        acc1 = jnp.where(valid[o_out - p2:o_out - p2 + Lh], acc1, 0.0)
        # Re-use the staging buffer for activated h (conv-1 taps already consumed).
        wk_ref[0:Lh, :] = _leaky(acc1, slope).astype(mm_dtype)

        # ---- conv 2 (dilation 1), accumulator initialised with residual + bias.
        acc2 = (xs_ref[o_out:o_out + L_out, :]
                + jnp.broadcast_to(b2_ref[b].astype(f32), (L_out, C)))
        if fold:
            lhs = jnp.concatenate(
                [wk_ref[k:k + L_out, :] for k in range(K)], axis=-1)
            acc2 = acc2 + jnp.dot(lhs, w2_ref[b], preferred_element_type=f32)
        else:
            for k in range(K):
                acc2 = acc2 + jnp.dot(wk_ref[k:k + L_out, :], w2_ref[b, k],
                                      preferred_element_type=f32)

        if b < B - 1:
            # Write the updated x back for the next branch; rows outside the
            # real sequence are zeroed so the next conv's padding stays correct.
            xs_ref[o_out:o_out + L_out, :] = jnp.where(
                valid[o_out:o_out + L_out], acc2, 0.0)
        else:
            o_ref[0] = acc2.astype(o_ref.dtype)


def resblock_forward(x, params, *, slope, mm_dtype=jnp.bfloat16, tile_t=512,
                     fold_taps=None):
    """ResBlock forward: for each (w1,b1,w2,b2,dilation) in params,
       x = x + Conv1d_1(LeakyReLU(Conv1d_d(LeakyReLU(x)))), all fused in one call.

    x: (N, T, C) channels-last.  w1, w2: (K, Cin, Cout).  b1, b2: (1, C).
    NOTE: the zero-halo-before-activation trick requires activation(0) == 0
    (true for LeakyReLU); do not silently swap in another activation.
    """
    N, T, C = x.shape
    B = len(params)
    K = params[0][0].shape[0]
    dils = tuple(int(p[4]) for p in params)
    assert K % 2 == 1, "kernel_size must be odd for 'same' padding"
    if fold_taps is None:
        fold_taps = C < 128          # deep-contraction matmul pays off at small C

    p2 = (K - 1) // 2
    Ha = tuple(_round8(d * (K - 1) // 2 + p2) for d in dils)  # per-branch halo, 8-aligned
    Hb = sum(Ha)                        # slab halo per side == halo fetch block
    Tt = Hb * max(1, min(_cdiv(T, Hb), max(1, tile_t // Hb)))  # time tile (mult of Hb)
    T_pad = Tt * _cdiv(T, Tt)
    n_t = T_pad // Tt
    r = Tt // Hb
    n_hb = T_pad // Hb
    S = Tt + 2 * Hb

    x_in = x if T_pad == T else jnp.pad(x, ((0, 0), (0, T_pad - T), (0, 0)))

    if fold_taps:
        # Pre-reshape weights to (K*Cin, Cout): matches concat([tap0,tap1,...], lanes).
        W1 = jnp.stack([p[0].reshape(K * C, C) for p in params]).astype(mm_dtype)
        W2 = jnp.stack([p[2].reshape(K * C, C) for p in params]).astype(mm_dtype)
        w_spec = pl.BlockSpec((B, K * C, C), lambda n, t: (0, 0, 0))
    else:
        W1 = jnp.stack([p[0] for p in params]).astype(mm_dtype)
        W2 = jnp.stack([p[2] for p in params]).astype(mm_dtype)
        w_spec = pl.BlockSpec((B, K, C, C), lambda n, t: (0, 0, 0, 0))
    B1 = jnp.stack([p[1].reshape(1, C) for p in params]).astype(jnp.float32)
    B2 = jnp.stack([p[3].reshape(1, C) for p in params]).astype(jnp.float32)

    kern = functools.partial(resblock_kernel, K=K, dils=dils, Tt=Tt, Hb=Hb, Ha=Ha,
                             p2=p2, T_true=T, slope=slope, mm_dtype=mm_dtype,
                             fold=fold_taps)

    # Explicit VMEM budget: double-buffered x views + output, weights/biases,
    # scratch slabs, plus headroom for in-kernel f32 temporaries.
    bx = jnp.dtype(x.dtype).itemsize
    bm = jnp.dtype(mm_dtype).itemsize
    est = (2 * (2 * Hb + 2 * Tt) * C * bx
           + 2 * (W1.size + W2.size) * bm + 2 * (B1.size + B2.size) * 4
           + S * C * (4 + bm)
           + 8 * S * C * 4)
    vmem_limit = int(min(64 * 2 ** 20, max(32 * 2 ** 20, 2 * est)))

    out = pl.pallas_call(
        kern,
        out_shape=jax.ShapeDtypeStruct((N, T_pad, C), x.dtype),
        grid=(N, n_t),
        in_specs=[
            # left halo / centre tile / right halo of x (same array, three views)
            pl.BlockSpec((1, Hb, C), lambda n, t: (n, jnp.maximum(t * r - 1, 0), 0)),
            pl.BlockSpec((1, Tt, C), lambda n, t: (n, t, 0)),
            pl.BlockSpec((1, Hb, C), lambda n, t: (n, jnp.minimum((t + 1) * r, n_hb - 1), 0)),
            # weights / biases: constant index_map -> fetched once, stay in VMEM
            w_spec,
            pl.BlockSpec((B, 1, C), lambda n, t: (0, 0, 0)),
            w_spec,
            pl.BlockSpec((B, 1, C), lambda n, t: (0, 0, 0)),
        ],
        out_specs=pl.BlockSpec((1, Tt, C), lambda n, t: (n, t, 0)),
        scratch_shapes=[pltpu.VMEM((S, C), jnp.float32),   # running x slab (residual)
                        pltpu.VMEM((S, C), mm_dtype)],     # staged LReLU(x) / h buffer
        compiler_params=pltpu.CompilerParams(
            dimension_semantics=("parallel", "parallel"),
            vmem_limit_bytes=vmem_limit),
    )(x_in, x_in, x_in, W1, B1, W2, B2)

    return out if T_pad == T else out[:, :T, :]


# ----------------------------- pure-JAX reference -----------------------------
def _ref_leaky_conv(x, w_t, b, dilation, slope):
    a = jnp.where(x >= 0, x, slope * x)
    K = w_t.shape[0]
    pad = dilation * (K - 1) // 2
    ap = jnp.pad(a, ((0, 0), (pad, pad), (0, 0)))
    T = x.shape[1]
    out = b[None, :, :]
    for k in range(K):
        out = out + jnp.einsum('ntc,cd->ntd',
                               ap[:, k * dilation:k * dilation + T, :], w_t[k])
    return out


def _ref_resblock(x, params, slope):
    for (w1, b1, w2, b2, dilation) in params:
        h = _ref_leaky_conv(x, w1, b1, dilation, slope)
        x = x + _ref_leaky_conv(h, w2, b2, 1, slope)
    return x


# ---------------------------------- driver ----------------------------------
if __name__ == "__main__":
    # ResBlock(n_channels=32, kernel_size=3, dilations=[1, 3], relu_leakage=0.1)
    N, T, C = 2, 16, 32
    K = 3
    dilations = [1, 3]
    slope = 0.1

    key = jax.random.PRNGKey(0)
    x_key, x2_key, *p_keys = jax.random.split(key, 2 + 4 * len(dilations))
    x = jax.random.normal(x_key, (N, T, C), dtype=jnp.float32)

    params = []
    ki = 0
    for d in dilations:
        # PyTorch Conv1d weight layout: (Cout, Cin, K); pre-transpose to (K, Cin, Cout).
        w1_pt = 0.05 * jax.random.normal(p_keys[ki + 0], (C, C, K), dtype=jnp.float32)
        b1 = 0.05 * jax.random.normal(p_keys[ki + 1], (C,), dtype=jnp.float32)
        w2_pt = 0.05 * jax.random.normal(p_keys[ki + 2], (C, C, K), dtype=jnp.float32)
        b2 = 0.05 * jax.random.normal(p_keys[ki + 3], (C,), dtype=jnp.float32)
        ki += 4
        params.append((jnp.transpose(w1_pt, (2, 1, 0)), b1.reshape(1, C),
                       jnp.transpose(w2_pt, (2, 1, 0)), b2.reshape(1, C), d))

    ref = _ref_resblock(x, params, slope)

    # f32-matmul path (folded taps): tight check against the pure-JAX reference.
    out_f32 = jax.block_until_ready(
        resblock_forward(x, params, slope=slope, mm_dtype=jnp.float32))
    assert out_f32.shape == (N, T, C)
    assert jnp.allclose(out_f32, ref, atol=1e-4, rtol=1e-4), "f32 path mismatch"

    # default bf16-MXU path: looser check (bf16 operand rounding).
    out_bf16 = jax.block_until_ready(resblock_forward(x, params, slope=slope))
    assert jnp.allclose(out_bf16, ref, atol=3e-2, rtol=3e-2), "bf16 path mismatch"

    # Multi-tile / ragged-T path: exercises cross-tile halos, index clamping and
    # boundary masks across both fused branches.
    x2 = jax.random.normal(x2_key, (1, 40, C), dtype=jnp.float32)
    ref2 = _ref_resblock(x2, params, slope)
    out2 = jax.block_until_ready(
        resblock_forward(x2, params, slope=slope, mm_dtype=jnp.float32, tile_t=16))
    assert jnp.allclose(out2, ref2, atol=1e-4, rtol=1e-4), "tiled path mismatch"

    # Same, with the per-tap K-matmul path (used when C >= 128).
    out3 = jax.block_until_ready(
        resblock_forward(x2, params, slope=slope, mm_dtype=jnp.float32, tile_t=16,
                         fold_taps=False))
    assert jnp.allclose(out3, ref2, atol=1e-4, rtol=1e-4), "k-loop path mismatch"

    print("KERNEL_OK")
</pallas_src>

<mosaic_0001>
module attributes {stable_mosaic.version = 11 : i64} {
  func.func @resblock_kernel(%arg0: i32, %arg1: i32, %arg2: memref<1x16x32xf32, #tpu.memory_space<vmem>>, %arg3: memref<1x16x32xf32, #tpu.memory_space<vmem>>, %arg4: memref<1x16x32xf32, #tpu.memory_space<vmem>>, %arg5: memref<2x96x32xf32, #tpu.memory_space<vmem>>, %arg6: memref<2x1x32xf32, #tpu.memory_space<vmem>>, %arg7: memref<2x96x32xf32, #tpu.memory_space<vmem>>, %arg8: memref<2x1x32xf32, #tpu.memory_space<vmem>>, %arg9: memref<1x16x32xf32, #tpu.memory_space<vmem>>, %arg10: memref<48x32xf32, #tpu.memory_space<vmem>>, %arg11: memref<48x32xf32, #tpu.memory_space<vmem>>) attributes {dimension_semantics = [#tpu.dimension_semantics<parallel>, #tpu.dimension_semantics<parallel>], iteration_bounds = array<i64: 2, 1>, scalar_prefetch = 0 : i64, scratch_operands = 2 : i64, tpu.core_type = #tpu.core_type<tc>, window_params = [{transform_indices = @transform_0, window_bounds = array<i64: 1, 16, 32>}, {transform_indices = @transform_1, window_bounds = array<i64: 1, 16, 32>}, {transform_indices = @transform_2, window_bounds = array<i64: 1, 16, 32>}, {pipeline_mode = #tpu.pipeline_mode<synchronous>, transform_indices = @transform_3, window_bounds = array<i64: 2, 96, 32>}, {pipeline_mode = #tpu.pipeline_mode<synchronous>, transform_indices = @transform_4, window_bounds = array<i64: 2, 1, 32>}, {pipeline_mode = #tpu.pipeline_mode<synchronous>, transform_indices = @transform_5, window_bounds = array<i64: 2, 96, 32>}, {pipeline_mode = #tpu.pipeline_mode<synchronous>, transform_indices = @transform_6, window_bounds = array<i64: 2, 1, 32>}, {transform_indices = @transform_7, window_bounds = array<i64: 1, 16, 32>}]} {
    %c0_i32 = arith.constant 0 : i32
    %0 = arith.cmpi sgt, %arg1, %c0_i32 : i32
    %c0 = arith.constant 0 : index
    %c0_0 = arith.constant 0 : index
    %c0_1 = arith.constant 0 : index
    %1 = vector.load %arg2[%c0, %c0_0, %c0_1] : memref<1x16x32xf32, #tpu.memory_space<vmem>>, vector<1x16x32xf32>
    %2 = vector.shape_cast %1 : vector<1x16x32xf32> to vector<16x32xf32>
    %cst = arith.constant 0.000000e+00 : f32
    %3 = vector.broadcast %cst : f32 to vector<16x32xf32>
    %4 = arith.select %0, %2, %3 : vector<16x32xf32>
    %c0_2 = arith.constant 0 : index
    %c0_3 = arith.constant 0 : index
    %5 = vector.load %arg10[%c0_2, %c0_3] : memref<48x32xf32, #tpu.memory_space<vmem>>, vector<16x32xf32>
    tpu.vector_store %arg10[%c0_2, %c0_3], %4 {strides = array<i32>} : memref<48x32xf32, #tpu.memory_space<vmem>>, vector<16x32xf32>,
    %c0_4 = arith.constant 0 : index
    %c0_5 = arith.constant 0 : index
    %c0_6 = arith.constant 0 : index
    %6 = vector.load %arg3[%c0_4, %c0_5, %c0_6] : memref<1x16x32xf32, #tpu.memory_space<vmem>>, vector<1x16x32xf32>
    %7 = vector.shape_cast %6 : vector<1x16x32xf32> to vector<16x32xf32>
    %c16 = arith.constant 16 : index
    %c0_7 = arith.constant 0 : index
    %8 = vector.load %arg10[%c16, %c0_7] : memref<48x32xf32, #tpu.memory_space<vmem>>, vector<16x32xf32>
    tpu.vector_store %arg10[%c16, %c0_7], %7 {strides = array<i32>} : memref<48x32xf32, #tpu.memory_space<vmem>>, vector<16x32xf32>,
    %c0_i32_8 = arith.constant 0 : i32
    %9 = arith.cmpi slt, %arg1, %c0_i32_8 : i32
    %c0_9 = arith.constant 0 : index
    %c0_10 = arith.constant 0 : index
    %c0_11 = arith.constant 0 : index
    %10 = vector.load %arg4[%c0_9, %c0_10, %c0_11] : memref<1x16x32xf32, #tpu.memory_space<vmem>>, vector<1x16x32xf32>
    %11 = vector.shape_cast %10 : vector<1x16x32xf32> to vector<16x32xf32>
    %cst_12 = arith.constant 0.000000e+00 : f32
    %12 = vector.broadcast %cst_12 : f32 to vector<16x32xf32>
    %13 = arith.select %9, %11, %12 : vector<16x32xf32>
    %c32 = arith.constant 32 : index
    %c0_13 = arith.constant 0 : index
    %14 = vector.load %arg10[%c32, %c0_13] : memref<48x32xf32, #tpu.memory_space<vmem>>, vector<16x32xf32>
    tpu.vector_store %arg10[%c32, %c0_13], %13 {strides = array<i32>} : memref<48x32xf32, #tpu.memory_space<vmem>>, vector<16x32xf32>,
    %c16_i32 = arith.constant 16 : i32
    %15 = arith.muli %arg1, %c16_i32 : i32
    %c16_i32_14 = arith.constant 16 : i32
    %16 = arith.subi %15, %c16_i32_14 : i32
    %17 = tpu.iota {dimensions = array<i32: 0>} : vector<48x1xi32>
    %18 = vector.broadcast %16 : i32 to vector<48x1xi32>
    %19 = arith.addi %18, %17 : vector<48x1xi32>
    %c0_i32_15 = arith.constant 0 : i32
    %20 = vector.broadcast %c0_i32_15 : i32 to vector<48x1xi32>
    %21 = arith.cmpi sge, %19, %20 : vector<48x1xi32>
    %c16_i32_16 = arith.constant 16 : i32
    %22 = vector.broadcast %c16_i32_16 : i32 to vector<48x1xi32>
    %23 = arith.cmpi slt, %19, %22 : vector<48x1xi32>
    %24 = arith.andi %21, %23 : vector<48x1xi1>
    %c0_17 = arith.constant 0 : index
    %c0_18 = arith.constant 0 : index
    %25 = vector.load %arg10[%c0_17, %c0_18] : memref<48x32xf32, #tpu.memory_space<vmem>>, vector<48x32xf32>
    %cst_19 = arith.constant 0.000000e+00 : f32
    %26 = vector.broadcast %cst_19 : f32 to vector<48x32xf32>
    %27 = arith.cmpf oge, %25, %26 : vector<48x32xf32>
    %cst_20 = arith.constant 1.000000e-01 : f32
    %28 = vector.broadcast %cst_20 : f32 to vector<48x32xf32>
    %29 = arith.mulf %28, %25 : vector<48x32xf32>
    %30 = arith.select %27, %25, %29 : vector<48x32xi1>, vector<48x32xf32>
    %c0_21 = arith.constant 0 : index
    %c0_22 = arith.constant 0 : index
    %31 = vector.load %arg11[%c0_21, %c0_22] : memref<48x32xf32, #tpu.memory_space<vmem>>, vector<48x32xf32>
    tpu.vector_store %arg11[%c0_21, %c0_22], %30 {strides = array<i32>} : memref<48x32xf32, #tpu.memory_space<vmem>>, vector<48x32xf32>,
    %c0_23 = arith.constant 0 : index
    %c0_24 = arith.constant 0 : index
    %c0_25 = arith.constant 0 : index
    %32 = vector.load %arg6[%c0_23, %c0_24, %c0_25] : memref<2x1x32xf32, #tpu.memory_space<vmem>>, vector<1x1x32xf32>
    %33 = vector.shape_cast %32 : vector<1x1x32xf32> to vector<1x32xf32>
    %34 = vector.shape_cast %33 : vector<1x32xf32> to vector<1x32xf32>
    %35 = vector.broadcast %34 : vector<1x32xf32> to vector<34x32xf32>
    %c6 = arith.constant 6 : index
    %c0_26 = arith.constant 0 : index
    %36 = vector.load %arg11[%c6, %c0_26] : memref<48x32xf32, #tpu.memory_space<vmem>>, vector<34x32xf32>
    %c7 = arith.constant 7 : index
    %c0_27 = arith.constant 0 : index
    %37 = vector.load %arg11[%c7, %c0_27] : memref<48x32xf32, #tpu.memory_space<vmem>>, vector<34x32xf32>
    %c8 = arith.constant 8 : index
    %c0_28 = arith.constant 0 : index
    %38 = vector.load %arg11[%c8, %c0_28] : memref<48x32xf32, #tpu.memory_space<vmem>>, vector<34x32xf32>
    %39 = tpu.concatenate %36, %37, %38 in 1 : vector<34x32xf32>, vector<34x32xf32>, vector<34x32xf32> -> vector<34x96xf32>
    %c0_29 = arith.constant 0 : index
    %c0_30 = arith.constant 0 : index
    %c0_31 = arith.constant 0 : index
    %40 = vector.load %arg5[%c0_29, %c0_30, %c0_31] : memref<2x96x32xf32, #tpu.memory_space<vmem>>, vector<1x96x32xf32>
    %41 = vector.shape_cast %40 : vector<1x96x32xf32> to vector<96x32xf32>
    %cst_32 = arith.constant dense<0.000000e+00> : vector<34x32xf32>
    %42 = tpu.matmul %39, %41, %cst_32 {dimension_numbers = #tpu.dot_dimension_numbers<[1], [0], [0], [1], [0, 0, 1, 1], [], []>} : vector<34x96xf32>, vector<96x32xf32>, vector<34x32xf32> -> vector<34x32xf32>
    %43 = arith.addf %35, %42 : vector<34x32xf32>
    %44 = vector.extract_strided_slice %24 {offsets = [7, 0], sizes = [34, 1], strides = [1, 1]} : vector<48x1xi1> to vector<34x1xi1>
    %cst_33 = arith.constant 0.000000e+00 : f32
    %45 = vector.shape_cast %44 : vector<34x1xi1> to vector<34x1xi1>
    %46 = vector.broadcast %45 : vector<34x1xi1> to vector<34x32xi1>
    %47 = vector.broadcast %cst_33 : f32 to vector<34x32xf32>
    %48 = arith.select %46, %43, %47 : vector<34x32xi1>, vector<34x32xf32>
    %cst_34 = arith.constant 0.000000e+00 : f32
    %49 = vector.broadcast %cst_34 : f32 to vector<34x32xf32>
    %50 = arith.cmpf oge, %48, %49 : vector<34x32xf32>
    %cst_35 = arith.constant 1.000000e-01 : f32
    %51 = vector.broadcast %cst_35 : f32 to vector<34x32xf32>
    %52 = arith.mulf %51, %48 : vector<34x32xf32>
    %53 = arith.select %50, %48, %52 : vector<34x32xi1>, vector<34x32xf32>
    %c0_36 = arith.constant 0 : index
    %c0_37 = arith.constant 0 : index
    %54 = vector.load %arg11[%c0_36, %c0_37] : memref<48x32xf32, #tpu.memory_space<vmem>>, vector<34x32xf32>
    tpu.vector_store %arg11[%c0_36, %c0_37], %53 {strides = array<i32>} : memref<48x32xf32, #tpu.memory_space<vmem>>, vector<34x32xf32>,
    %c8_38 = arith.constant 8 : index
    %c0_39 = arith.constant 0 : index
    %55 = vector.load %arg10[%c8_38, %c0_39] : memref<48x32xf32, #tpu.memory_space<vmem>>, vector<32x32xf32>
    %c0_40 = arith.constant 0 : index
    %c0_41 = arith.constant 0 : index
    %c0_42 = arith.constant 0 : index
    %56 = vector.load %arg8[%c0_40, %c0_41, %c0_42] : memref<2x1x32xf32, #tpu.memory_space<vmem>>, vector<1x1x32xf32>
    %57 = vector.shape_cast %56 : vector<1x1x32xf32> to vector<1x32xf32>
    %58 = vector.shape_cast %57 : vector<1x32xf32> to vector<1x32xf32>
    %59 = vector.broadcast %58 : vector<1x32xf32> to vector<32x32xf32>
    %60 = arith.addf %55, %59 : vector<32x32xf32>
    %c0_43 = arith.constant 0 : index
    %c0_44 = arith.constant 0 : index
    %61 = vector.load %arg11[%c0_43, %c0_44] : memref<48x32xf32, #tpu.memory_space<vmem>>, vector<32x32xf32>
    %c1 = arith.constant 1 : index
    %c0_45 = arith.constant 0 : index
    %62 = vector.load %arg11[%c1, %c0_45] : memref<48x32xf32, #tpu.memory_space<vmem>>, vector<32x32xf32>
    %c2 = arith.constant 2 : index
    %c0_46 = arith.constant 0 : index
    %63 = vector.load %arg11[%c2, %c0_46] : memref<48x32xf32, #tpu.memory_space<vmem>>, vector<32x32xf32>
    %64 = tpu.concatenate %61, %62, %63 in 1 : vector<32x32xf32>, vector<32x32xf32>, vector<32x32xf32> -> vector<32x96xf32>
    %c0_47 = arith.constant 0 : index
    %c0_48 = arith.constant 0 : index
    %c0_49 = arith.constant 0 : index
    %65 = vector.load %arg7[%c0_47, %c0_48, %c0_49] : memref<2x96x32xf32, #tpu.memory_space<vmem>>, vector<1x96x32xf32>
    %66 = vector.shape_cast %65 : vector<1x96x32xf32> to vector<96x32xf32>
    %cst_50 = arith.constant dense<0.000000e+00> : vector<32x32xf32>
    %67 = tpu.matmul %64, %66, %cst_50 {dimension_numbers = #tpu.dot_dimension_numbers<[1], [0], [0], [1], [0, 0, 1, 1], [], []>} : vector<32x96xf32>, vector<96x32xf32>, vector<32x32xf32> -> vector<32x32xf32>
    %68 = arith.addf %60, %67 : vector<32x32xf32>
    %69 = vector.extract_strided_slice %24 {offsets = [8, 0], sizes = [32, 1], strides = [1, 1]} : vector<48x1xi1> to vector<32x1xi1>
    %cst_51 = arith.constant 0.000000e+00 : f32
    %70 = vector.shape_cast %69 : vector<32x1xi1> to vector<32x1xi1>
    %71 = vector.broadcast %70 : vector<32x1xi1> to vector<32x32xi1>
    %72 = vector.broadcast %cst_51 : f32 to vector<32x32xf32>
    %73 = arith.select %71, %68, %72 : vector<32x32xi1>, vector<32x32xf32>
    %c8_52 = arith.constant 8 : index
    %c0_53 = arith.constant 0 : index
    %74 = vector.load %arg10[%c8_52, %c0_53] : memref<48x32xf32, #tpu.memory_space<vmem>>, vector<32x32xf32>
    tpu.vector_store %arg10[%c8_52, %c0_53], %73 {strides = array<i32>} : memref<48x32xf32, #tpu.memory_space<vmem>>, vector<32x32xf32>,
    %c8_54 = arith.constant 8 : index
    %c0_55 = arith.constant 0 : index
    %75 = vector.load %arg10[%c8_54, %c0_55] : memref<48x32xf32, #tpu.memory_space<vmem>>, vector<32x32xf32>
    %cst_56 = arith.constant 0.000000e+00 : f32
    %76 = vector.broadcast %cst_56 : f32 to vector<32x32xf32>
    %77 = arith.cmpf oge, %75, %76 : vector<32x32xf32>
    %cst_57 = arith.constant 1.000000e-01 : f32
    %78 = vector.broadcast %cst_57 : f32 to vector<32x32xf32>
    %79 = arith.mulf %78, %75 : vector<32x32xf32>
    %80 = arith.select %77, %75, %79 : vector<32x32xi1>, vector<32x32xf32>
    %c8_58 = arith.constant 8 : index
    %c0_59 = arith.constant 0 : index
    %81 = vector.load %arg11[%c8_58, %c0_59] : memref<48x32xf32, #tpu.memory_space<vmem>>, vector<32x32xf32>
    tpu.vector_store %arg11[%c8_58, %c0_59], %80 {strides = array<i32>} : memref<48x32xf32, #tpu.memory_space<vmem>>, vector<32x32xf32>,
    %c1_60 = arith.constant 1 : index
    %c0_61 = arith.constant 0 : index
    %c0_62 = arith.constant 0 : index
    %82 = vector.load %arg6[%c1_60, %c0_61, %c0_62] : memref<2x1x32xf32, #tpu.memory_space<vmem>>, vector<1x1x32xf32>
    %83 = vector.shape_cast %82 : vector<1x1x32xf32> to vector<1x32xf32>
    %84 = vector.shape_cast %83 : vector<1x32xf32> to vector<1x32xf32>
    %85 = vector.broadcast %84 : vector<1x32xf32> to vector<18x32xf32>
    %c12 = arith.constant 12 : index
    %c0_63 = arith.constant 0 : index
    %86 = vector.load %arg11[%c12, %c0_63] : memref<48x32xf32, #tpu.memory_space<vmem>>, vector<18x32xf32>
    %c15 = arith.constant 15 : index
    %c0_64 = arith.constant 0 : index
    %87 = vector.load %arg11[%c15, %c0_64] : memref<48x32xf32, #tpu.memory_space<vmem>>, vector<18x32xf32>
    %c18 = arith.constant 18 : index
    %c0_65 = arith.constant 0 : index
    %88 = vector.load %arg11[%c18, %c0_65] : memref<48x32xf32, #tpu.memory_space<vmem>>, vector<18x32xf32>
    %89 = tpu.concatenate %86, %87, %88 in 1 : vector<18x32xf32>, vector<18x32xf32>, vector<18x32xf32> -> vector<18x96xf32>
    %c1_66 = arith.constant 1 : index
    %c0_67 = arith.constant 0 : index
    %c0_68 = arith.constant 0 : index
    %90 = vector.load %arg5[%c1_66, %c0_67, %c0_68] : memref<2x96x32xf32, #tpu.memory_space<vmem>>, vector<1x96x32xf32>
    %91 = vector.shape_cast %90 : vector<1x96x32xf32> to vector<96x32xf32>
    %cst_69 = arith.constant dense<0.000000e+00> : vector<18x32xf32>
    %92 = tpu.matmul %89, %91, %cst_69 {dimension_numbers = #tpu.dot_dimension_numbers<[1], [0], [0], [1], [0, 0, 1, 1], [], []>} : vector<18x96xf32>, vector<96x32xf32>, vector<18x32xf32> -> vector<18x32xf32>
    %93 = arith.addf %85, %92 : vector<18x32xf32>
    %94 = vector.extract_strided_slice %24 {offsets = [15, 0], sizes = [18, 1], strides = [1, 1]} : vector<48x1xi1> to vector<18x1xi1>
    %cst_70 = arith.constant 0.000000e+00 : f32
    %95 = vector.shape_cast %94 : vector<18x1xi1> to vector<18x1xi1>
    %96 = vector.broadcast %95 : vector<18x1xi1> to vector<18x32xi1>
    %97 = vector.broadcast %cst_70 : f32 to vector<18x32xf32>
    %98 = arith.select %96, %93, %97 : vector<18x32xi1>, vector<18x32xf32>
    %cst_71 = arith.constant 0.000000e+00 : f32
    %99 = vector.broadcast %cst_71 : f32 to vector<18x32xf32>
    %100 = arith.cmpf oge, %98, %99 : vector<18x32xf32>
    %cst_72 = arith.constant 1.000000e-01 : f32
    %101 = vector.broadcast %cst_72 : f32 to vector<18x32xf32>
    %102 = arith.mulf %101, %98 : vector<18x32xf32>
    %103 = arith.select %100, %98, %102 : vector<18x32xi1>, vector<18x32xf32>
    %c0_73 = arith.constant 0 : index
    %c0_74 = arith.constant 0 : index
    %104 = vector.load %arg11[%c0_73, %c0_74] : memref<48x32xf32, #tpu.memory_space<vmem>>, vector<18x32xf32>
    tpu.vector_store %arg11[%c0_73, %c0_74], %103 {strides = array<i32>} : memref<48x32xf32, #tpu.memory_space<vmem>>, vector<18x32xf32>,
    %c16_75 = arith.constant 16 : index
    %c0_76 = arith.constant 0 : index
    %105 = vector.load %arg10[%c16_75, %c0_76] : memref<48x32xf32, #tpu.memory_space<vmem>>, vector<16x32xf32>
    %c1_77 = arith.constant 1 : index
    %c0_78 = arith.constant 0 : index
    %c0_79 = arith.constant 0 : index
    %106 = vector.load %arg8[%c1_77, %c0_78, %c0_79] : memref<2x1x32xf32, #tpu.memory_space<vmem>>, vector<1x1x32xf32>
    %107 = vector.shape_cast %106 : vector<1x1x32xf32> to vector<1x32xf32>
    %108 = vector.shape_cast %107 : vector<1x32xf32> to vector<1x32xf32>
    %109 = vector.broadcast %108 : vector<1x32xf32> to vector<16x32xf32>
    %110 = arith.addf %105, %109 : vector<16x32xf32>
    %c0_80 = arith.constant 0 : index
    %c0_81 = arith.constant 0 : index
    %111 = vector.load %arg11[%c0_80, %c0_81] : memref<48x32xf32, #tpu.memory_space<vmem>>, vector<16x32xf32>
    %c1_82 = arith.constant 1 : index
    %c0_83 = arith.constant 0 : index
    %112 = vector.load %arg11[%c1_82, %c0_83] : memref<48x32xf32, #tpu.memory_space<vmem>>, vector<16x32xf32>
    %c2_84 = arith.constant 2 : index
    %c0_85 = arith.constant 0 : index
    %113 = vector.load %arg11[%c2_84, %c0_85] : memref<48x32xf32, #tpu.memory_space<vmem>>, vector<16x32xf32>
    %114 = tpu.concatenate %111, %112, %113 in 1 : vector<16x32xf32>, vector<16x32xf32>, vector<16x32xf32> -> vector<16x96xf32>
    %c1_86 = arith.constant 1 : index
    %c0_87 = arith.constant 0 : index
    %c0_88 = arith.constant 0 : index
    %115 = vector.load %arg7[%c1_86, %c0_87, %c0_88] : memref<2x96x32xf32, #tpu.memory_space<vmem>>, vector<1x96x32xf32>
    %116 = vector.shape_cast %115 : vector<1x96x32xf32> to vector<96x32xf32>
    %cst_89 = arith.constant dense<0.000000e+00> : vector<16x32xf32>
    %117 = tpu.matmul %114, %116, %cst_89 {dimension_numbers = #tpu.dot_dimension_numbers<[1], [0], [0], [1], [0, 0, 1, 1], [], []>} : vector<16x96xf32>, vector<96x32xf32>, vector<16x32xf32> -> vector<16x32xf32>
    %118 = arith.addf %110, %117 : vector<16x32xf32>
    %c0_90 = arith.constant 0 : index
    %c0_91 = arith.constant 0 : index
    %c0_92 = arith.constant 0 : index
    %119 = vector.load %arg9[%c0_90, %c0_91, %c0_92] : memref<1x16x32xf32, #tpu.memory_space<vmem>>, vector<1x16x32xf32>
    %120 = vector.shape_cast %119 : vector<1x16x32xf32> to vector<16x32xf32>
    %121 = vector.shape_cast %118 : vector<16x32xf32> to vector<1x16x32xf32>
    tpu.vector_store %arg9[%c0_90, %c0_91, %c0_92], %121 {strides = array<i32>} : memref<1x16x32xf32, #tpu.memory_space<vmem>>, vector<1x16x32xf32>,
    return
  }
  func.func @transform_0(%arg0: i32, %arg1: i32) -> (i32, i32, i32) {
    %c1_i32 = arith.constant 1 : i32
    %0 = arith.muli %arg1, %c1_i32 : i32
    %c1_i32_0 = arith.constant 1 : i32
    %1 = arith.subi %0, %c1_i32_0 : i32
    %c0_i32 = arith.constant 0 : i32
    %2 = arith.maxsi %1, %c0_i32 : i32
    %c0_i32_1 = arith.constant 0 : i32
    %c0_i32_2 = arith.constant 0 : i32
    return %arg0, %2, %c0_i32_1 : i32, i32, i32
  }
  func.func @transform_1(%arg0: i32, %arg1: i32) -> (i32, i32, i32) {
    %c0_i32 = arith.constant 0 : i32
    %c0_i32_0 = arith.constant 0 : i32
    return %arg0, %arg1, %c0_i32 : i32, i32, i32
  }
  func.func @transform_2(%arg0: i32, %arg1: i32) -> (i32, i32, i32) {
    %c1_i32 = arith.constant 1 : i32
    %0 = arith.addi %arg1, %c1_i32 : i32
    %c1_i32_0 = arith.constant 1 : i32
    %1 = arith.muli %0, %c1_i32_0 : i32
    %c0_i32 = arith.constant 0 : i32
    %2 = arith.minsi %1, %c0_i32 : i32
    %c0_i32_1 = arith.constant 0 : i32
    %c0_i32_2 = arith.constant 0 : i32
    return %arg0, %2, %c0_i32_1 : i32, i32, i32
  }
  func.func @transform_3(%arg0: i32, %arg1: i32) -> (i32, i32, i32) {
    %c0_i32 = arith.constant 0 : i32
    %c0_i32_0 = arith.constant 0 : i32
    %c0_i32_1 = arith.constant 0 : i32
    %c0_i32_2 = arith.constant 0 : i32
    return %c0_i32, %c0_i32_0, %c0_i32_1 : i32, i32, i32
  }
  func.func @transform_4(%arg0: i32, %arg1: i32) -> (i32, i32, i32) {
    %c0_i32 = arith.constant 0 : i32
    %c0_i32_0 = arith.constant 0 : i32
    %c0_i32_1 = arith.constant 0 : i32
    %c0_i32_2 = arith.constant 0 : i32
    return %c0_i32, %c0_i32_0, %c0_i32_1 : i32, i32, i32
  }
  func.func @transform_5(%arg0: i32, %arg1: i32) -> (i32, i32, i32) {
    %c0_i32 = arith.constant 0 : i32
    %c0_i32_0 = arith.constant 0 : i32
    %c0_i32_1 = arith.constant 0 : i32
    %c0_i32_2 = arith.constant 0 : i32
    return %c0_i32, %c0_i32_0, %c0_i32_1 : i32, i32, i32
  }
  func.func @transform_6(%arg0: i32, %arg1: i32) -> (i32, i32, i32) {
    %c0_i32 = arith.constant 0 : i32
    %c0_i32_0 = arith.constant 0 : i32
    %c0_i32_1 = arith.constant 0 : i32
    %c0_i32_2 = arith.constant 0 : i32
    return %c0_i32, %c0_i32_0, %c0_i32_1 : i32, i32, i32
  }
  func.func @transform_7(%arg0: i32, %arg1: i32) -> (i32, i32, i32) {
    %c0_i32 = arith.constant 0 : i32
    %c0_i32_0 = arith.constant 0 : i32
    return %arg0, %arg1, %c0_i32 : i32, i32, i32
  }
}

</mosaic_0001>

<llo_original>
// kernel: tpu_custom_call.1
$region0: #{tpu_custom_call.1}
  #allocation0 [shape = 'u32[]', space=smem, size = 0x4, offset = 0x4, fixed_abs, tag = 'smem constant byte address 0x4 - core index']
  #allocation1 [shape = 'u32[72,128]{1,0:T(1,128)}', space=vmem, size = 0x9000, scoped, tag = 'internal scratch']
  #allocation2 [shape = 'f32[48,32]{1,0:T(8,128)}', space=vmem, size = 0x6000, scoped, tag = 'scratch operand']
  #allocation3 [shape = 'f32[48,32]{1,0:T(8,128)}', space=vmem, size = 0x6000, scoped, tag = 'scratch operand']
  %s0 = inlined_call_operand.vmem [shape: f32[2,16,32], index: 0, kind: input, shape index: {}]
  %s1 = inlined_call_operand.vmem [shape: f32[2,16,32], index: 1, kind: input, shape index: {}]
  %s2 = inlined_call_operand.vmem [shape: f32[2,16,32], index: 2, kind: input, shape index: {}]
  %s3 = inlined_call_operand.vmem [shape: f32[2,96,32], index: 3, kind: input, shape index: {}]
  %s4 = inlined_call_operand.vmem [shape: f32[2,1,32], index: 4, kind: input, shape index: {}]
  %s5 = inlined_call_operand.vmem [shape: f32[2,96,32], index: 5, kind: input, shape index: {}]
  %s6 = inlined_call_operand.vmem [shape: f32[2,1,32], index: 6, kind: input, shape index: {}]
  %s7 = inlined_call_operand.hbm [shape: f32[2,16,32], index: 7, kind: output, shape index: {}]
  %s8 = sld [smem:[#allocation0]]
  $region61: #{tpu_custom_call.1} parent=0
    _
  %s10 = ssub.s32 1, %s8
  %s11 = scalar_select 0, %s10, %s8
  $region1: #{tpu_custom_call.1} parent=0
    #allocation4 [shape = 'u8[16384]{0}', space=vmem, size = 0x4000, scoped, tag = 'output window, operand 0']
    #allocation5 [shape = 's32[2]{0}', space=sflag, size = 0x8, scoped, tag = 'scoped memory for tpu_custom_call.1']
    %12 = vsyncpa [#allocation5], 0
    %s13 = scalar_lea.sflag [#allocation5], 1
    %14 = vsyncpa %s13, 0
    loop: start=0, step=1, limit=4
    $region2: #{tpu_custom_call.1} parent=1 // loop_pre_header
      _
    $region3: #{tpu_custom_call.1} parent=1 // loop_header
      %s16 = sphi 0, %s20
      %p17 = scmp.ge.s32.totalorder %s16, 4
      %s23 = sphi 0, %s35
      %s24 = sphi 0, %s31
      %s25 = sphi 0, %s23
      %s26 = sphi 0, %s24
      %s27 = sphi 0, %s25
      %s28 = sphi 0, %s26
      %s46 = sphi 0, %s48
      %s49 = sphi 0, %s46
      %s50 = sphi 0, %s49
      %s66 = sphi 0, %s50
      %s74 = sphi 0, %s76
      %s77 = sphi 0, %s74
      %s78 = sphi 0, %s77
      %s94 = sphi 0, %s78
      %s108 = sphi 0, %s110
      %s111 = sphi 0, %s108
      %s112 = sphi 0, %s111
      %s128 = sphi 0, %s112
      %s132 = sphi 0, %s132
      %s134 = sphi 0, %s132
      %s135 = sphi 0, %s134
      %s149 = sphi 0, %s135
      %s153 = sphi 0, %s153
      %s155 = sphi 0, %s153
      %s156 = sphi 0, %s155
      %s170 = sphi 0, %s156
      %s174 = sphi 0, %s174
      %s176 = sphi 0, %s174
      %s177 = sphi 0, %s176
      %s191 = sphi 0, %s177
      %s195 = sphi 0, %s195
      %s197 = sphi 0, %s195
      %s198 = sphi 0, %s197
      %s212 = sphi 0, %s198
      %s220 = sphi 0, %s222
      %s223 = sphi 0, %s220
      %s224 = sphi 0, %s223
      %s240 = sphi 0, %s224
    $region4: #{tpu_custom_call.1} parent=1 // loop_header_branch
      %19 = sbr.rel (%p17) target = $region8
    $region5: #{tpu_custom_call.1} parent=1 // loop_body
      %s21 = ssub.s32 %s16, 1
      %s22 = ssub.s32 %s16, 2
      %s29 = sadd.s32 1, %s24
      %p30 = scmp.ge.s32.totalorder %s29, 1
      %s31 = scalar_select %p30, 0, %s29
      %s32 = sadd.s32 1, %s23
      %s33 = scalar_select %p30, %s32, %s23
      %p34 = scmp.ge.s32.totalorder %s33, 2
      %s35 = scalar_select %p34, 0, %s33
      %s36 = ssub.s32 %s24, 1
      %p37 = scmp.gt.s32.totalorder %s36, 0
      %s38 = scalar_select %p37, %s36, 0
      %s39 = ssub.s32 %s31, 1
      %p40 = scmp.gt.s32.totalorder %s39, 0
      %s41 = scalar_select %p40, %s39, 0
      %s42 = ssub.s32 %s23, %s35
      %s43 = ssub.s32 %s38, %s41
      %s44 = sor.u32 %s42, %s43
      %p45 = scmp.eq.s32.totalorder %s44, 0
      %s47 = sadd.s32 %s46, 1
      %s48 = scalar_select %p45, %s46, %s47
      %p51 = pneg %p45
      %p52 = scmp.eq.s32.totalorder %s16, 1
      %p53 = por %p51, %p52
      %p54 = scmp.ne.s32.totalorder %s46, %s49
      %p55 = scmp.eq.s32.totalorder %s16, 0
      %p56 = por %p54, %p55
      %p57 = scmp.ne.s32.totalorder %s46, %s49
      %p58 = scmp.eq.s32.totalorder %s21, 1
      %p59 = por %p57, %p58
      %p60 = scmp.ne.s32.totalorder %s49, %s50
      %p61 = scmp.eq.s32.totalorder %s21, 0
      %p62 = por %p60, %p61
      %p63 = scmp.ne.s32.totalorder %s49, %s50
      %p64 = scmp.eq.s32.totalorder %s22, 1
      %p65 = por %p63, %p64
      %p67 = scmp.ne.s32.totalorder %s50, %s66
      %p68 = scmp.eq.s32.totalorder %s22, 0
      %p69 = por %p67, %p68
      %s70 = ssub.s32 %s23, %s35
      %s71 = ssub.s32 %s24, %s31
      %s72 = sor.u32 %s70, %s71
      %p73 = scmp.eq.s32.totalorder %s72, 0
      %s75 = sadd.s32 %s74, 1
      %s76 = scalar_select %p73, %s74, %s75
      %p79 = pneg %p73
      %p80 = scmp.eq.s32.totalorder %s16, 1
      %p81 = por %p79, %p80
      %p82 = scmp.ne.s32.totalorder %s74, %s77
      %p83 = scmp.eq.s32.totalorder %s16, 0
      %p84 = por %p82, %p83
      %p85 = scmp.ne.s32.totalorder %s74, %s77
      %p86 = scmp.eq.s32.totalorder %s21, 1
      %p87 = por %p85, %p86
      %p88 = scmp.ne.s32.totalorder %s77, %s78
      %p89 = scmp.eq.s32.totalorder %s21, 0
      %p90 = por %p88, %p89
      %p91 = scmp.ne.s32.totalorder %s77, %s78
      %p92 = scmp.eq.s32.totalorder %s22, 1
      %p93 = por %p91, %p92
      %p95 = scmp.ne.s32.totalorder %s78, %s94
      %p96 = scmp.eq.s32.totalorder %s22, 0
      %p97 = por %p95, %p96
      %s98 = sadd.s32 %s24, 1
      %p99 = scmp.lt.s32.totalorder %s98, 0
      %s100 = scalar_select %p99, %s98, 0
      %s101 = sadd.s32 %s31, 1
      %p102 = scmp.lt.s32.totalorder %s101, 0
      %s103 = scalar_select %p102, %s101, 0
      %s104 = ssub.s32 %s23, %s35
      %s105 = ssub.s32 %s100, %s103
      %s106 = sor.u32 %s104, %s105
      %p107 = scmp.eq.s32.totalorder %s106, 0
      %s109 = sadd.s32 %s108, 1
      %s110 = scalar_select %p107, %s108, %s109
      %p113 = pneg %p107
      %p114 = scmp.eq.s32.totalorder %s16, 1
      %p115 = por %p113, %p114
      %p116 = scmp.ne.s32.totalorder %s108, %s111
      %p117 = scmp.eq.s32.totalorder %s16, 0
      %p118 = por %p116, %p117
      %p119 = scmp.ne.s32.totalorder %s108, %s111
      %p120 = scmp.eq.s32.totalorder %s21, 1
      %p121 = por %p119, %p120
      %p122 = scmp.ne.s32.totalorder %s111, %s112
      %p123 = scmp.eq.s32.totalorder %s21, 0
      %p124 = por %p122, %p123
      %p125 = scmp.ne.s32.totalorder %s111, %s112
      %p126 = scmp.eq.s32.totalorder %s22, 1
      %p127 = por %p125, %p126
      %p129 = scmp.ne.s32.totalorder %s112, %s128
      %p130 = scmp.eq.s32.totalorder %s22, 0
      %p131 = por %p129, %p130
      %s133 = sadd.s32 %s132, 1
      %p136 = scmp.eq.s32.totalorder %s16, 1
      %p137 = scmp.ne.s32.totalorder %s132, %s134
      %p138 = scmp.eq.s32.totalorder %s16, 0
      %p139 = por %p137, %p138
      %p140 = scmp.ne.s32.totalorder %s132, %s134
      %p141 = scmp.eq.s32.totalorder %s21, 1
      %p142 = por %p140, %p141
      %p143 = scmp.ne.s32.totalorder %s134, %s135
      %p144 = scmp.eq.s32.totalorder %s21, 0
      %p145 = por %p143, %p144
      %p146 = scmp.ne.s32.totalorder %s134, %s135
      %p147 = scmp.eq.s32.totalorder %s22, 1
      %p148 = por %p146, %p147
      %p150 = scmp.ne.s32.totalorder %s135, %s149
      %p151 = scmp.eq.s32.totalorder %s22, 0
      %p152 = por %p150, %p151
      %s154 = sadd.s32 %s153, 1
      %p157 = scmp.eq.s32.totalorder %s16, 1
      %p158 = scmp.ne.s32.totalorder %s153, %s155
      %p159 = scmp.eq.s32.totalorder %s16, 0
      %p160 = por %p158, %p159
      %p161 = scmp.ne.s32.totalorder %s153, %s155
      %p162 = scmp.eq.s32.totalorder %s21, 1
      %p163 = por %p161, %p162
      %p164 = scmp.ne.s32.totalorder %s155, %s156
      %p165 = scmp.eq.s32.totalorder %s21, 0
      %p166 = por %p164, %p165
      %p167 = scmp.ne.s32.totalorder %s155, %s156
      %p168 = scmp.eq.s32.totalorder %s22, 1
      %p169 = por %p167, %p168
      %p171 = scmp.ne.s32.totalorder %s156, %s170
      %p172 = scmp.eq.s32.totalorder %s22, 0
      %p173 = por %p171, %p172
      %s175 = sadd.s32 %s174, 1
      %p178 = scmp.eq.s32.totalorder %s16, 1
      %p179 = scmp.ne.s32.totalorder %s174, %s176
      %p180 = scmp.eq.s32.totalorder %s16, 0
      %p181 = por %p179, %p180
      %p182 = scmp.ne.s32.totalorder %s174, %s176
      %p183 = scmp.eq.s32.totalorder %s21, 1
      %p184 = por %p182, %p183
      %p185 = scmp.ne.s32.totalorder %s176, %s177
      %p186 = scmp.eq.s32.totalorder %s21, 0
      %p187 = por %p185, %p186
      %p188 = scmp.ne.s32.totalorder %s176, %s177
      %p189 = scmp.eq.s32.totalorder %s22, 1
      %p190 = por %p188, %p189
      %p192 = scmp.ne.s32.totalorder %s177, %s191
      %p193 = scmp.eq.s32.totalorder %s22, 0
      %p194 = por %p192, %p193
      %s196 = sadd.s32 %s195, 1
      %p199 = scmp.eq.s32.totalorder %s16, 1
      %p200 = scmp.ne.s32.totalorder %s195, %s197
      %p201 = scmp.eq.s32.totalorder %s16, 0
      %p202 = por %p200, %p201
      %p203 = scmp.ne.s32.totalorder %s195, %s197
      %p204 = scmp.eq.s32.totalorder %s21, 1
      %p205 = por %p203, %p204
      %p206 = scmp.ne.s32.totalorder %s197, %s198
      %p207 = scmp.eq.s32.totalorder %s21, 0
      %p208 = por %p206, %p207
      %p209 = scmp.ne.s32.totalorder %s197, %s198
      %p210 = scmp.eq.s32.totalorder %s22, 1
      %p211 = por %p209, %p210
      %p213 = scmp.ne.s32.totalorder %s198, %s212
      %p214 = scmp.eq.s32.totalorder %s22, 0
      %p215 = por %p213, %p214
      %s216 = ssub.s32 %s23, %s35
      %s217 = ssub.s32 %s24, %s31
      %s218 = sor.u32 %s216, %s217
      %p219 = scmp.eq.s32.totalorder %s218, 0
      %s221 = sadd.s32 %s220, 1
      %s222 = scalar_select %p219, %s220, %s221
      %p225 = pneg %p219
      %p226 = scmp.eq.s32.totalorder %s16, 1
      %p227 = por %p225, %p226
      %p228 = scmp.ne.s32.totalorder %s220, %s223
      %p229 = scmp.eq.s32.totalorder %s16, 0
      %p230 = por %p228, %p229
      %p231 = scmp.ne.s32.totalorder %s220, %s223
      %p232 = scmp.eq.s32.totalorder %s21, 1
      %p233 = por %p231, %p232
      %p234 = scmp.ne.s32.totalorder %s223, %s224
      %p235 = scmp.eq.s32.totalorder %s21, 0
      %p236 = por %p234, %p235
      %p237 = scmp.ne.s32.totalorder %s223, %s224
      %p238 = scmp.eq.s32.totalorder %s22, 1
      %p239 = por %p237, %p238
      %p241 = scmp.ne.s32.totalorder %s224, %s240
      %p242 = scmp.eq.s32.totalorder %s22, 0
      %p243 = por %p241, %p242
      %p244 = scmp.le.s32.totalorder 1, %s16
      %p245 = scmp.lt.s32.totalorder %s16, 3
      %p246 = pnand %p244, %p245
      %p247 = pneg %p246
      // Predicated region
      $region9: #{tpu_custom_call.1} parent=5 // pred_check
        _
      $region10: #{tpu_custom_call.1} parent=5 // pred_check_branch
        %249 = sbr.rel (%p246) target = $region12
      $region11: #{tpu_custom_call.1} parent=5 // pred_region
        %s250 = ssub.s32 %s16, 1
        // Predicated region
        $region13: #{tpu_custom_call.1} parent=11 // pred_check
          %p251 = pneg %p145
        $region14: #{tpu_custom_call.1} parent=11 // pred_check_branch
          %253 = sbr.rel (%p251) target = $region16
        $region15: #{tpu_custom_call.1} parent=11 // pred_region
          _
        $region16: #{tpu_custom_call.1} parent=11 // pred_fallthru
          _
        // Predicated region
        $region17: #{tpu_custom_call.1} parent=11 // pred_check
          %p254 = pneg %p166
        $region18: #{tpu_custom_call.1} parent=11 // pred_check_branch
          %256 = sbr.rel (%p254) target = $region20
        $region19: #{tpu_custom_call.1} parent=11 // pred_region
          _
        $region20: #{tpu_custom_call.1} parent=11 // pred_fallthru
          _
        // Predicated region
        $region21: #{tpu_custom_call.1} parent=11 // pred_check
          %p257 = pneg %p187
        $region22: #{tpu_custom_call.1} parent=11 // pred_check_branch
          %259 = sbr.rel (%p257) target = $region24
        $region23: #{tpu_custom_call.1} parent=11 // pred_region
          _
        $region24: #{tpu_custom_call.1} parent=11 // pred_fallthru
          _
        // Predicated region
        $region25: #{tpu_custom_call.1} parent=11 // pred_check
          %p260 = pneg %p208
        $region26: #{tpu_custom_call.1} parent=11 // pred_check_branch
          %262 = sbr.rel (%p260) target = $region28
        $region27: #{tpu_custom_call.1} parent=11 // pred_region
          _
        $region28: #{tpu_custom_call.1} parent=11 // pred_fallthru
          _
      $region12: #{tpu_custom_call.1} parent=5 // pred_fallthru
        _
      %p263 = scmp.lt.s32.totalorder %s16, 2
      // Predicated region
      $region29: #{tpu_custom_call.1} parent=5 // pred_check
        %p264 = pneg %p263
      $region30: #{tpu_custom_call.1} parent=5 // pred_check_branch
        %266 = sbr.rel (%p264) target = $region32
      $region31: #{tpu_custom_call.1} parent=5 // pred_region
        // Predicated region
        $region33: #{tpu_custom_call.1} parent=31 // pred_check
          %p267 = pneg %p56
        $region34: #{tpu_custom_call.1} parent=31 // pred_check_branch
          %269 = sbr.rel (%p267) target = $region36
        $region35: #{tpu_custom_call.1} parent=31 // pred_region
          %s270 = ssub.s32 %s24, 1
          %p271 = scmp.gt.s32.totalorder %s270, 0
          %s272 = scalar_select %p271, %s270, 0
          %s273 = smul.u32 2, %s272
          %p274 = scmp.lt.s32.totalorder %s23, 1
          %s275 = scalar_select %p274, %s23, 1
          %p276 = scmp.lt.s32.totalorder %s273, 1
          %s277 = scalar_select %p276, %s273, 1
          %s278 = smul.addr %s275, 2
          %s279 = sadd.s32 %s277, %s278
          %s280 = smul.addr %s279, 8
          %s281 = scalar_lea.vmem %s0, %s280
          %s282 = ssub.s32 %s24, 1
          %p283 = scmp.gt.s32.totalorder %s282, 0
          %s284 = scalar_select %p283, %s282, 0
          %s285 = smul.u32 2, %s284
        $region36: #{tpu_custom_call.1} parent=31 // pred_fallthru
          _
        // Predicated region
        $region37: #{tpu_custom_call.1} parent=31 // pred_check
          %p286 = pneg %p84
        $region38: #{tpu_custom_call.1} parent=31 // pred_check_branch
          %288 = sbr.rel (%p286) target = $region40
        $region39: #{tpu_custom_call.1} parent=31 // pred_region
          %s289 = smul.u32 2, %s24
          %p290 = scmp.lt.s32.totalorder %s23, 1
          %s291 = scalar_select %p290, %s23, 1
          %p292 = scmp.lt.s32.totalorder %s289, 1
          %s293 = scalar_select %p292, %s289, 1
          %s294 = smul.addr %s291, 2
          %s295 = sadd.s32 %s293, %s294
          %s296 = smul.addr %s295, 8
          %s297 = scalar_lea.vmem %s1, %s296
          %s298 = smul.u32 2, %s24
        $region40: #{tpu_custom_call.1} parent=31 // pred_fallthru
          _
        // Predicated region
        $region41: #{tpu_custom_call.1} parent=31 // pred_check
          %p299 = pneg %p118
        $region42: #{tpu_custom_call.1} parent=31 // pred_check_branch
          %301 = sbr.rel (%p299) target = $region44
        $region43: #{tpu_custom_call.1} parent=31 // pred_region
          %s302 = sadd.s32 %s24, 1
          %p303 = scmp.lt.s32.totalorder %s302, 0
          %s304 = scalar_select %p303, %s302, 0
          %s305 = smul.u32 2, %s304
          %p306 = scmp.lt.s32.totalorder %s23, 1
          %s307 = scalar_select %p306, %s23, 1
          %p308 = scmp.lt.s32.totalorder %s305, 1
          %s309 = scalar_select %p308, %s305, 1
          %s310 = smul.addr %s307, 2
          %s311 = sadd.s32 %s309, %s310
          %s312 = smul.addr %s311, 8
          %s313 = scalar_lea.vmem %s2, %s312
          %s314 = sadd.s32 %s24, 1
          %p315 = scmp.lt.s32.totalorder %s314, 0
          %s316 = scalar_select %p315, %s314, 0
          %s317 = smul.u32 2, %s316
        $region44: #{tpu_custom_call.1} parent=31 // pred_fallthru
          _
      $region32: #{tpu_custom_call.1} parent=5 // pred_fallthru
        _
      %p318 = scmp.le.s32.totalorder 1, %s16
      %p319 = scmp.lt.s32.totalorder %s16, 3
      %p320 = pnand %p318, %p319
      %p321 = pneg %p320
      // Predicated region
      $region45: #{tpu_custom_call.1} parent=5 // pred_check
        _
      $region46: #{tpu_custom_call.1} parent=5 // pred_check_branch
        %323 = sbr.rel (%p320) target = $region48
      $region47: #{tpu_custom_call.1} parent=5 // pred_region
        %s324 = ssub.s32 %s16, 1
        %s325 = ssub.s32 %s26, 1
        %p326 = scmp.gt.s32.totalorder %s325, 0
        %s327 = scalar_select %p326, %s325, 0
        %s328 = smul.u32 2, %s327
        %p329 = scmp.lt.s32.totalorder %s25, 1
        %s330 = scalar_select %p329, %s25, 1
        %p331 = scmp.lt.s32.totalorder %s328, 1
        %s332 = scalar_select %p331, %s328, 1
        %s333 = smul.addr %s330, 2
        %s334 = sadd.s32 %s332, %s333
        %s335 = smul.addr %s334, 8
        %s336 = scalar_lea.vmem %s0, %s335
        %p337 = pneg %p62
        %p338 = pneg %p59
        %s339 = smul.u32 2, %s26
        %p340 = scmp.lt.s32.totalorder %s25, 1
        %s341 = scalar_select %p340, %s25, 1
        %p342 = scmp.lt.s32.totalorder %s339, 1
        %s343 = scalar_select %p342, %s339, 1
        %s344 = smul.addr %s341, 2
        %s345 = sadd.s32 %s343, %s344
        %s346 = smul.addr %s345, 8
        %s347 = scalar_lea.vmem %s1, %s346
        %p348 = pneg %p90
        %p349 = pneg %p87
        %s350 = sadd.s32 %s26, 1
        %p351 = scmp.lt.s32.totalorder %s350, 0
        %s352 = scalar_select %p351, %s350, 0
        %s353 = smul.u32 2, %s352
        %p354 = scmp.lt.s32.totalorder %s25, 1
        %s355 = scalar_select %p354, %s25, 1
        %p356 = scmp.lt.s32.totalorder %s353, 1
        %s357 = scalar_select %p356, %s353, 1
        %s358 = smul.addr %s355, 2
        %s359 = sadd.s32 %s357, %s358
        %s360 = smul.addr %s359, 8
        %s361 = scalar_lea.vmem %s2, %s360
        %p362 = pneg %p124
        %p363 = pneg %p121
        %p364 = pneg %p145
        %p365 = pneg %p142
        %p366 = pneg %p166
        %p367 = pneg %p163
        %p368 = pneg %p187
        %p369 = pneg %p184
        %p370 = pneg %p208
        %p371 = pneg %p205
        %p372 = pneg %p236
        %p373 = pneg %p233
        %s374 = sand.u32 %s223, 1
        %s375 = scalar_lea.sflag [#allocation5], %s374
        %s376 = sand.u32 %s223, 1
        %s377 = smul.addr %s376, 16
        %s378 = scalar_lea.vmem [#allocation4], %s377
        %s379 = ssub.s32 %s26, 1
        %p380 = scmp.gt.s32.totalorder %s379, 0
        %s381 = scalar_select %p380, %s379, 0
        %s382 = smul.u32 2, %s381
        %p383 = scmp.lt.s32.totalorder %s25, 1
        %s384 = scalar_select %p383, %s25, 1
        %p385 = scmp.lt.s32.totalorder %s382, 1
        %s386 = scalar_select %p385, %s382, 1
        %s387 = smul.addr %s384, 2
        %s388 = sadd.s32 %s386, %s387
        %s389 = smul.addr %s388, 8
        %s390 = scalar_lea.vmem %s0, %s389
        %s391 = ssub.s32 %s26, 1
        %p392 = scmp.gt.s32.totalorder %s391, 0
        %s393 = scalar_select %p392, %s391, 0
        %s394 = smul.u32 2, %s393
        %s395 = smul.u32 2, %s26
        %p396 = scmp.lt.s32.totalorder %s25, 1
        %s397 = scalar_select %p396, %s25, 1
        %p398 = scmp.lt.s32.totalorder %s395, 1
        %s399 = scalar_select %p398, %s395, 1
        %s400 = smul.addr %s397, 2
        %s401 = sadd.s32 %s399, %s400
        %s402 = smul.addr %s401, 8
        %s403 = scalar_lea.vmem %s1, %s402
        %s404 = smul.u32 2, %s26
        %s405 = sadd.s32 %s26, 1
        %p406 = scmp.lt.s32.totalorder %s405, 0
        %s407 = scalar_select %p406, %s405, 0
        %s408 = smul.u32 2, %s407
        %p409 = scmp.lt.s32.totalorder %s25, 1
        %s410 = scalar_select %p409, %s25, 1
        %p411 = scmp.lt.s32.totalorder %s408, 1
        %s412 = scalar_select %p411, %s408, 1
        %s413 = smul.addr %s410, 2
        %s414 = sadd.s32 %s412, %s413
        %s415 = smul.addr %s414, 8
        %s416 = scalar_lea.vmem %s2, %s415
        %s417 = sadd.s32 %s26, 1
        %p418 = scmp.lt.s32.totalorder %s417, 0
        %s419 = scalar_select %p418, %s417, 0
        %s420 = smul.u32 2, %s419
        %s421 = smul.u32 2, %s26
        %p422 = scmp.gt.s32.totalorder %s26, 0
        %v423 = vld [vmem:[%s390] sm:$0xff]
        %v424 = vld [vmem:[%s390 + $0x8] sm:$0xff]
        %s425 = scalar_select %p422, 1, 0
        %v426 = vstv %s425
        %vm427 = vcmp.eq.s32.totalorder %v426, 1
        %v428 = vsel %vm427, %v423, 0.0
        %v429 = vsel %vm427, %v424, 0.0
        %vm430 = vcmask 261120
        %431 = vst.msk [vmem:[#allocation2] sm:$0xff] %vm430, %v428
        %432 = vst.msk [vmem:[#allocation2 + $0x8] sm:$0xff] %vm430, %v429
        %v433 = vld [vmem:[%s403] sm:$0xff]
        %v434 = vld [vmem:[%s403 + $0x8] sm:$0xff]
        %435 = vst.msk [vmem:[#allocation2 + $0x10] sm:$0xff] %vm430, %v433
        %436 = vst.msk [vmem:[#allocation2 + $0x18] sm:$0xff] %vm430, %v434
        %p437 = scmp.lt.s32.totalorder %s26, 0
        %v438 = vld [vmem:[%s416] sm:$0xff]
        %v439 = vld [vmem:[%s416 + $0x8] sm:$0xff]
        %s440 = scalar_select %p437, 1, 0
        %v441 = vstv %s440
        %vm442 = vcmp.eq.s32.totalorder %v441, 1
        %v443 = vsel %vm442, %v438, 0.0
        %v444 = vsel %vm442, %v439, 0.0
        %445 = vst.msk [vmem:[#allocation2 + $0x20] sm:$0xff] %vm430, %v443
        %446 = vst.msk [vmem:[#allocation2 + $0x28] sm:$0xff] %vm430, %v444
        %s447 = smul.u32 %s26, 16
        %s448 = ssub.s32 %s447, 16
        %v449 = vlaneseq
        %v450 = vshrl.u32 %v449, 7
        %v451 = vadd.s32 %v450, 8
        %v452 = vadd.s32 %v450, 16
        %v453 = vadd.s32 %v450, 24
        %v454 = vadd.s32 %v450, 32
        %v455 = vadd.s32 %v450, 40
        %v456 = vstv %s448
        %v457 = vadd.s32 %v456, %v450
        %v458 = vadd.s32 %v456, %v451
        %v459 = vadd.s32 %v456, %v452
        %v460 = vadd.s32 %v456, %v453
        %v461 = vadd.s32 %v456, %v454
        %v462 = vadd.s32 %v456, %v455
        %vm463 = vcmp.ge.s32.totalorder %v457, 0
        %vm464 = vcmp.ge.s32.totalorder %v458, 0
        %vm465 = vcmp.ge.s32.totalorder %v459, 0
        %vm466 = vcmp.ge.s32.totalorder %v460, 0
        %vm467 = vcmp.ge.s32.totalorder %v461, 0
        %vm468 = vcmp.ge.s32.totalorder %v462, 0
        %vm469 = vcmp.lt.s32.totalorder %v457, 16
        %vm470 = vcmp.lt.s32.totalorder %v458, 16
        %vm471 = vcmp.lt.s32.totalorder %v459, 16
        %vm472 = vcmp.lt.s32.totalorder %v460, 16
        %vm473 = vcmp.lt.s32.totalorder %v461, 16
        %vm474 = vcmp.lt.s32.totalorder %v462, 16
        %vm475 = vmand %vm463, %vm469
        %vm476 = vmand %vm464, %vm470
        %vm477 = vmand %vm465, %vm471
        %vm478 = vmand %vm466, %vm472
        %vm479 = vmand %vm467, %vm473
        %vm480 = vmand %vm468, %vm474
        %v481 = vld [vmem:[#allocation2] sm:$0xff]
        %v482 = vld [vmem:[#allocation2 + $0x8] sm:$0xff]
        %v483 = vld [vmem:[#allocation2 + $0x10] sm:$0xff]
        %v484 = vld [vmem:[#allocation2 + $0x18] sm:$0xff]
        %v485 = vld [vmem:[#allocation2 + $0x20] sm:$0xff]
        %v486 = vld [vmem:[#allocation2 + $0x28] sm:$0xff]
        %vm487 = vcmp.ge.f32.partialorder %v481, 0.0
        %vm488 = vcmp.ge.f32.partialorder %v482, 0.0
        %vm489 = vcmp.ge.f32.partialorder %v483, 0.0
        %vm490 = vcmp.ge.f32.partialorder %v484, 0.0
        %vm491 = vcmp.ge.f32.partialorder %v485, 0.0
        %vm492 = vcmp.ge.f32.partialorder %v486, 0.0
        %v493 = vmul.f32 %v481, 0.1
        %v494 = vmul.f32 %v482, 0.1
        %v495 = vmul.f32 %v483, 0.1
        %v496 = vmul.f32 %v484, 0.1
        %v497 = vmul.f32 %v485, 0.1
        %v498 = vmul.f32 %v486, 0.1
        %v499 = vsel %vm487, %v481, %v493
        %v500 = vsel %vm488, %v482, %v494
        %v501 = vsel %vm489, %v483, %v495
        %v502 = vsel %vm490, %v484, %v496
        %v503 = vsel %vm491, %v485, %v497
        %v504 = vsel %vm492, %v486, %v498
        %505 = vst.msk [vmem:[#allocation3] sm:$0xff] %vm430, %v499
        %506 = vst.msk [vmem:[#allocation3 + $0x8] sm:$0xff] %vm430, %v500
        %507 = vst.msk [vmem:[#allocation3 + $0x10] sm:$0xff] %vm430, %v501
        %508 = vst.msk [vmem:[#allocation3 + $0x18] sm:$0xff] %vm430, %v502
        %509 = vst.msk [vmem:[#allocation3 + $0x20] sm:$0xff] %vm430, %v503
        %510 = vst.msk [vmem:[#allocation3 + $0x28] sm:$0xff] %vm430, %v504
        %v511 = vld [vmem:[%s4] sm:$0x1]
        %v513 = vperm.slane %v511, 0
        %v515 = vld [vmem:[#allocation3 + $0x6] sm:$0xff]
        %v516 = vld [vmem:[#allocation3 + $0xe] sm:$0xff]
        %v517 = vld [vmem:[#allocation3 + $0x16] sm:$0xff]
        %v518 = vld [vmem:[#allocation3 + $0x1e] sm:$0xff]
        %v519 = vld [vmem:[#allocation3 + $0x26] sm:$0x3]
        %v520 = vld [vmem:[#allocation3 + $0x7] sm:$0xff]
        %v521 = vld [vmem:[#allocation3 + $0xf] sm:$0xff]
        %v522 = vld [vmem:[#allocation3 + $0x17] sm:$0xff]
        %v523 = vld [vmem:[#allocation3 + $0x1f] sm:$0xff]
        %v524 = vld [vmem:[#allocation3 + $0x27] sm:$0x3]
        %v525 = vld [vmem:[#allocation3 + $0x8] sm:$0xff]
        %v526 = vld [vmem:[#allocation3 + $0x10] sm:$0xff]
        %v527 = vld [vmem:[#allocation3 + $0x18] sm:$0xff]
        %v528 = vld [vmem:[#allocation3 + $0x20] sm:$0xff]
        %v529 = vld [vmem:[#allocation3 + $0x28] sm:$0x3]
        %535 = vrot.lane.b32.xlu0 %v520, 32
        %v536 = vpop.permute.xlu0 %535
        %537 = vrot.lane.b32.xlu0 %v521, 32
        %v538 = vpop.permute.xlu0 %537
        %539 = vrot.lane.b32.xlu0 %v522, 32
        %v540 = vpop.permute.xlu0 %539
        %541 = vrot.lane.b32.xlu0 %v523, 32
        %v542 = vpop.permute.xlu0 %541
        %543 = vrot.lane.b32.xlu0 %v524, 32
        %v544 = vpop.permute.xlu0 %543
        %555 = vrot.lane.b32.xlu0 %v525, 64
        %v556 = vpop.permute.xlu0 %555
        %557 = vrot.lane.b32.xlu0 %v526, 64
        %v558 = vpop.permute.xlu0 %557
        %559 = vrot.lane.b32.xlu0 %v527, 64
        %v560 = vpop.permute.xlu0 %559
        %561 = vrot.lane.b32.xlu0 %v528, 64
        %v562 = vpop.permute.xlu0 %561
        %563 = vrot.lane.b32.xlu0 %v529, 64
        %v564 = vpop.permute.xlu0 %563
        %v570 = vsel %vm430, %v515, %v536
        %v571 = vsel %vm430, %v516, %v538
        %v572 = vsel %vm430, %v517, %v540
        %v573 = vsel %vm430, %v518, %v542
        %v574 = vsel %vm430, %v519, %v544
        %vm575 = vcmask 523264
        %v576 = vsel %vm575, %v570, %v556
        %v577 = vsel %vm575, %v571, %v558
        %v578 = vsel %vm575, %v572, %v560
        %v579 = vsel %vm575, %v573, %v562
        %v580 = vsel %vm575, %v574, %v564
        %v581 = vld [vmem:[%s3] sm:$0xff]
        %v582 = vld [vmem:[%s3 + $0x8] sm:$0xff]
        %v583 = vld [vmem:[%s3 + $0x10] sm:$0xff]
        %v584 = vld [vmem:[%s3 + $0x18] sm:$0xff]
        %v585 = vld [vmem:[%s3 + $0x20] sm:$0xff]
        %v586 = vld [vmem:[%s3 + $0x28] sm:$0xff]
        %v587 = vld [vmem:[%s3 + $0x30] sm:$0xff]
        %v588 = vld [vmem:[%s3 + $0x38] sm:$0xff]
        %v589 = vld [vmem:[%s3 + $0x40] sm:$0xff]
        %v590 = vld [vmem:[%s3 + $0x48] sm:$0xff]
        %v591 = vld [vmem:[%s3 + $0x50] sm:$0xff]
        %v592 = vld [vmem:[%s3 + $0x58] sm:$0xff]
        %vm593 = vcmask 785408
        %v595 = vsel %vm593, %v576, 0
        %v598 = vsel %vm593, %v577, 0
        %v601 = vsel %vm593, %v578, 0
        %v604 = vsel %vm593, %v579, 0
        %v607 = vsel %vm593, %v580, 0
        %609 = vmatpush.msra.mxu0 0.0
        %610 = vmatpush.msra.mxu0 0.0
        %611 = vmatpush.msra.mxu0 0.0
        %612 = vmatpush.msra.mxu0 0.0
        %613 = vmatpush.msra.mxu0 %v592
        %614 = vmatpush.msra.mxu0 %v591
        %615 = vmatpush.msra.mxu0 %v590
        %616 = vmatpush.msra.mxu0 %v589
        %617 = vmatpush.msra.mxu0 %v588
        %618 = vmatpush.msra.mxu0 %v587
        %619 = vmatpush.msra.mxu0 %v586
        %620 = vmatpush.msra.mxu0 %v585
        %621 = vmatpush.msra.mxu0 %v584
        %622 = vmatpush.msra.mxu0 %v583
        %623 = vmatpush.msra.mxu0 %v582
        %624 = vmatpush.msra.mxu0 %v581
        %625 = vmatmul.f32.gmra.mxu0 %v595
        %v626 = vpop.f32.mrf.mxu0
        %v627 = vadd.f32 0.0, %v626
        %628 = vmatmul.f32.gmra.mxu0 %v598
        %v629 = vpop.f32.mrf.mxu0
        %v630 = vadd.f32 0.0, %v629
        %631 = vmatmul.f32.gmra.mxu0 %v601
        %v632 = vpop.f32.mrf.mxu0
        %v633 = vadd.f32 0.0, %v632
        %634 = vmatmul.f32.gmra.mxu0 %v604
        %v635 = vpop.f32.mrf.mxu0
        %v636 = vadd.f32 0.0, %v635
        %637 = vmatmul.f32.gmra.mxu0 %v607
        %v638 = vpop.f32.mrf.mxu0
        %v639 = vadd.f32 0.0, %v638
        %640 = vdwg.mxu0
        %v641 = vadd.f32 %v513, %v627
        %v642 = vadd.f32 %v513, %v630
        %v643 = vadd.f32 %v513, %v633
        %v644 = vadd.f32 %v513, %v636
        %v645 = vadd.f32 %v513, %v639
        %v646 = vsel %vm475, 1, 0
        %v647 = vsel %vm476, 1, 0
        %v648 = vsel %vm477, 1, 0
        %v649 = vsel %vm478, 1, 0
        %v650 = vsel %vm479, 1, 0
        %v651 = vsel %vm480, 1, 0
        %vm652 = vcmp.eq.s32.totalorder %v646, 1
        %vm653 = vcmp.eq.s32.totalorder %v647, 1
        %vm654 = vcmp.eq.s32.totalorder %v648, 1
        %vm655 = vcmp.eq.s32.totalorder %v649, 1
        %vm656 = vcmp.eq.s32.totalorder %v650, 1
        %vm657 = vcmp.eq.s32.totalorder %v651, 1
        %vm663 = vcmask 1046528
        %v664 = vrot.slane %v641, 1
        %v665 = vrot.slane %v642, 1
        %v666 = vsel %vm663, %v664, %v665
        %v667 = vrot.slane %v643, 1
        %v668 = vsel %vm663, %v665, %v667
        %v669 = vrot.slane %v644, 1
        %v670 = vsel %vm663, %v667, %v669
        %v671 = vrot.slane %v645, 1
        %v672 = vsel %vm663, %v669, %v671
        %v679 = vsel %vm652, %v664, 0.0
        %v680 = vsel %vm653, %v666, 0.0
        %v681 = vsel %vm654, %v668, 0.0
        %v682 = vsel %vm655, %v670, 0.0
        %v683 = vsel %vm656, %v672, 0.0
        %v684 = vsel %vm657, %v671, 0.0
        %vm685 = vcmp.ge.f32.partialorder %v679, 0.0
        %vm686 = vcmp.ge.f32.partialorder %v680, 0.0
        %vm687 = vcmp.ge.f32.partialorder %v681, 0.0
        %vm688 = vcmp.ge.f32.partialorder %v682, 0.0
        %vm689 = vcmp.ge.f32.partialorder %v683, 0.0
        %vm690 = vcmp.ge.f32.partialorder %v684, 0.0
        %v691 = vmul.f32 %v679, 0.1
        %v692 = vmul.f32 %v680, 0.1
        %v693 = vmul.f32 %v681, 0.1
        %v694 = vmul.f32 %v682, 0.1
        %v695 = vmul.f32 %v683, 0.1
        %v696 = vmul.f32 %v684, 0.1
        %v697 = vsel %vm685, %v679, %v691
        %v698 = vsel %vm686, %v680, %v692
        %v699 = vsel %vm687, %v681, %v693
        %v700 = vsel %vm688, %v682, %v694
        %v701 = vsel %vm689, %v683, %v695
        %v702 = vsel %vm690, %v684, %v696
        %vm703 = vcmask 261127
        %704 = vst.msk [vmem:[#allocation3 - $0x7] sm:$0x80] %vm703, %v697
        %705 = vst.msk [vmem:[#allocation3 + $0x1] sm:$0xff] %vm430, %v698
        %706 = vst.msk [vmem:[#allocation3 + $0x9] sm:$0xff] %vm430, %v699
        %707 = vst.msk [vmem:[#allocation3 + $0x11] sm:$0xff] %vm430, %v700
        %708 = vst.msk [vmem:[#allocation3 + $0x19] sm:$0xff] %vm430, %v701
        %vm709 = vcmask 253952
        %710 = vst.msk [vmem:[#allocation3 + $0x21] sm:$0x1] %vm709, %v702
        %v711 = vld [vmem:[#allocation2 + $0x8] sm:$0xff]
        %v712 = vld [vmem:[#allocation2 + $0x10] sm:$0xff]
        %v713 = vld [vmem:[#allocation2 + $0x18] sm:$0xff]
        %v714 = vld [vmem:[#allocation2 + $0x20] sm:$0xff]
        %v715 = vld [vmem:[%s6] sm:$0x1]
        %v717 = vperm.slane %v715, 0
        %v719 = vadd.f32 %v711, %v717
        %v720 = vadd.f32 %v712, %v717
        %v721 = vadd.f32 %v713, %v717
        %v722 = vadd.f32 %v714, %v717
        %v723 = vld [vmem:[#allocation3] sm:$0xff]
        %v724 = vld [vmem:[#allocation3 + $0x8] sm:$0xff]
        %v725 = vld [vmem:[#allocation3 + $0x10] sm:$0xff]
        %v726 = vld [vmem:[#allocation3 + $0x18] sm:$0xff]
        %v727 = vld [vmem:[#allocation3 + $0x1] sm:$0xff]
        %v728 = vld [vmem:[#allocation3 + $0x9] sm:$0xff]
        %v729 = vld [vmem:[#allocation3 + $0x11] sm:$0xff]
        %v730 = vld [vmem:[#allocation3 + $0x19] sm:$0xff]
        %v731 = vld [vmem:[#allocation3 + $0x2] sm:$0xff]
        %v732 = vld [vmem:[#allocation3 + $0xa] sm:$0xff]
        %v733 = vld [vmem:[#allocation3 + $0x12] sm:$0xff]
        %v734 = vld [vmem:[#allocation3 + $0x1a] sm:$0xff]
        %739 = vrot.lane.b32.xlu0 %v727, 32
        %v740 = vpop.permute.xlu0 %739
        %741 = vrot.lane.b32.xlu0 %v728, 32
        %v742 = vpop.permute.xlu0 %741
        %743 = vrot.lane.b32.xlu0 %v729, 32
        %v744 = vpop.permute.xlu0 %743
        %745 = vrot.lane.b32.xlu0 %v730, 32
        %v746 = vpop.permute.xlu0 %745
        %755 = vrot.lane.b32.xlu0 %v731, 64
        %v756 = vpop.permute.xlu0 %755
        %757 = vrot.lane.b32.xlu0 %v732, 64
        %v758 = vpop.permute.xlu0 %757
        %759 = vrot.lane.b32.xlu0 %v733, 64
        %v760 = vpop.permute.xlu0 %759
        %761 = vrot.lane.b32.xlu0 %v734, 64
        %v762 = vpop.permute.xlu0 %761
        %v767 = vsel %vm430, %v723, %v740
        %v768 = vsel %vm430, %v724, %v742
        %v769 = vsel %vm430, %v725, %v744
        %v770 = vsel %vm430, %v726, %v746
        %v771 = vsel %vm575, %v767, %v756
        %v772 = vsel %vm575, %v768, %v758
        %v773 = vsel %vm575, %v769, %v760
        %v774 = vsel %vm575, %v770, %v762
        %v775 = vld [vmem:[%s5] sm:$0xff]
        %v776 = vld [vmem:[%s5 + $0x8] sm:$0xff]
        %v777 = vld [vmem:[%s5 + $0x10] sm:$0xff]
        %v778 = vld [vmem:[%s5 + $0x18] sm:$0xff]
        %v779 = vld [vmem:[%s5 + $0x20] sm:$0xff]
        %v780 = vld [vmem:[%s5 + $0x28] sm:$0xff]
        %v781 = vld [vmem:[%s5 + $0x30] sm:$0xff]
        %v782 = vld [vmem:[%s5 + $0x38] sm:$0xff]
        %v783 = vld [vmem:[%s5 + $0x40] sm:$0xff]
        %v784 = vld [vmem:[%s5 + $0x48] sm:$0xff]
        %v785 = vld [vmem:[%s5 + $0x50] sm:$0xff]
        %v786 = vld [vmem:[%s5 + $0x58] sm:$0xff]
        %v788 = vsel %vm593, %v771, 0
        %v791 = vsel %vm593, %v772, 0
        %v794 = vsel %vm593, %v773, 0
        %v797 = vsel %vm593, %v774, 0
        %799 = vmatpush.msra.mxu0 0.0
        %800 = vmatpush.msra.mxu0 0.0
        %801 = vmatpush.msra.mxu0 0.0
        %802 = vmatpush.msra.mxu0 0.0
        %803 = vmatpush.msra.mxu0 %v786
        %804 = vmatpush.msra.mxu0 %v785
        %805 = vmatpush.msra.mxu0 %v784
        %806 = vmatpush.msra.mxu0 %v783
        %807 = vmatpush.msra.mxu0 %v782
        %808 = vmatpush.msra.mxu0 %v781
        %809 = vmatpush.msra.mxu0 %v780
        %810 = vmatpush.msra.mxu0 %v779
        %811 = vmatpush.msra.mxu0 %v778
        %812 = vmatpush.msra.mxu0 %v777
        %813 = vmatpush.msra.mxu0 %v776
        %814 = vmatpush.msra.mxu0 %v775
        %815 = vmatmul.f32.gmra.mxu0 %v788
        %v816 = vpop.f32.mrf.mxu0
        %v817 = vadd.f32 0.0, %v816
        %818 = vmatmul.f32.gmra.mxu0 %v791
        %v819 = vpop.f32.mrf.mxu0
        %v820 = vadd.f32 0.0, %v819
        %821 = vmatmul.f32.gmra.mxu0 %v794
        %v822 = vpop.f32.mrf.mxu0
        %v823 = vadd.f32 0.0, %v822
        %824 = vmatmul.f32.gmra.mxu0 %v797
        %v825 = vpop.f32.mrf.mxu0
        %v826 = vadd.f32 0.0, %v825
        %827 = vdwg.mxu0
        %v828 = vadd.f32 %v719, %v817
        %v829 = vadd.f32 %v720, %v820
        %v830 = vadd.f32 %v721, %v823
        %v831 = vadd.f32 %v722, %v826
        %v832 = vsel %vm653, %v828, 0.0
        %v833 = vsel %vm654, %v829, 0.0
        %v834 = vsel %vm655, %v830, 0.0
        %v835 = vsel %vm656, %v831, 0.0
        %836 = vst.msk [vmem:[#allocation2 + $0x8] sm:$0xff] %vm430, %v832
        %837 = vst.msk [vmem:[#allocation2 + $0x10] sm:$0xff] %vm430, %v833
        %838 = vst.msk [vmem:[#allocation2 + $0x18] sm:$0xff] %vm430, %v834
        %839 = vst.msk [vmem:[#allocation2 + $0x20] sm:$0xff] %vm430, %v835
        %v840 = vld [vmem:[#allocation2 + $0x8] sm:$0xff]
        %v841 = vld [vmem:[#allocation2 + $0x10] sm:$0xff]
        %v842 = vld [vmem:[#allocation2 + $0x18] sm:$0xff]
        %v843 = vld [vmem:[#allocation2 + $0x20] sm:$0xff]
        %vm844 = vcmp.ge.f32.partialorder %v840, 0.0
        %vm845 = vcmp.ge.f32.partialorder %v841, 0.0
        %vm846 = vcmp.ge.f32.partialorder %v842, 0.0
        %vm847 = vcmp.ge.f32.partialorder %v843, 0.0
        %v848 = vmul.f32 %v840, 0.1
        %v849 = vmul.f32 %v841, 0.1
        %v850 = vmul.f32 %v842, 0.1
        %v851 = vmul.f32 %v843, 0.1
        %v852 = vsel %vm844, %v840, %v848
        %v853 = vsel %vm845, %v841, %v849
        %v854 = vsel %vm846, %v842, %v850
        %v855 = vsel %vm847, %v843, %v851
        %856 = vst.msk [vmem:[#allocation3 + $0x8] sm:$0xff] %vm430, %v852
        %857 = vst.msk [vmem:[#allocation3 + $0x10] sm:$0xff] %vm430, %v853
        %858 = vst.msk [vmem:[#allocation3 + $0x18] sm:$0xff] %vm430, %v854
        %859 = vst.msk [vmem:[#allocation3 + $0x20] sm:$0xff] %vm430, %v855
        %s860 = scalar_lea.vmem %s4, 1
        %v861 = vld [vmem:[%s860] sm:$0x1]
        %v863 = vperm.slane %v861, 0
        %v865 = vld [vmem:[#allocation3 + $0xc] sm:$0xff]
        %v866 = vld [vmem:[#allocation3 + $0x14] sm:$0xff]
        %v867 = vld [vmem:[#allocation3 + $0x1c] sm:$0x3]
        %v868 = vld [vmem:[#allocation3 + $0xf] sm:$0xff]
        %v869 = vld [vmem:[#allocation3 + $0x17] sm:$0xff]
        %v870 = vld [vmem:[#allocation3 + $0x1f] sm:$0x3]
        %v871 = vld [vmem:[#allocation3 + $0x12] sm:$0xff]
        %v872 = vld [vmem:[#allocation3 + $0x1a] sm:$0xff]
        %v873 = vld [vmem:[#allocation3 + $0x22] sm:$0x3]
        %877 = vrot.lane.b32.xlu0 %v868, 32
        %v878 = vpop.permute.xlu0 %877
        %879 = vrot.lane.b32.xlu0 %v869, 32
        %v880 = vpop.permute.xlu0 %879
        %881 = vrot.lane.b32.xlu0 %v870, 32
        %v882 = vpop.permute.xlu0 %881
        %889 = vrot.lane.b32.xlu0 %v871, 64
        %v890 = vpop.permute.xlu0 %889
        %891 = vrot.lane.b32.xlu0 %v872, 64
        %v892 = vpop.permute.xlu0 %891
        %893 = vrot.lane.b32.xlu0 %v873, 64
        %v894 = vpop.permute.xlu0 %893
        %v898 = vsel %vm430, %v865, %v878
        %v899 = vsel %vm430, %v866, %v880
        %v900 = vsel %vm430, %v867, %v882
        %v901 = vsel %vm575, %v898, %v890
        %v902 = vsel %vm575, %v899, %v892
        %v903 = vsel %vm575, %v900, %v894
        %s904 = scalar_lea.vmem %s3, 96
        %v905 = vld [vmem:[%s904] sm:$0xff]
        %v906 = vld [vmem:[%s904 + $0x8] sm:$0xff]
        %v907 = vld [vmem:[%s904 + $0x10] sm:$0xff]
        %v908 = vld [vmem:[%s904 + $0x18] sm:$0xff]
        %v909 = vld [vmem:[%s904 + $0x20] sm:$0xff]
        %v910 = vld [vmem:[%s904 + $0x28] sm:$0xff]
        %v911 = vld [vmem:[%s904 + $0x30] sm:$0xff]
        %v912 = vld [vmem:[%s904 + $0x38] sm:$0xff]
        %v913 = vld [vmem:[%s904 + $0x40] sm:$0xff]
        %v914 = vld [vmem:[%s904 + $0x48] sm:$0xff]
        %v915 = vld [vmem:[%s904 + $0x50] sm:$0xff]
        %v916 = vld [vmem:[%s904 + $0x58] sm:$0xff]
        %v918 = vsel %vm593, %v901, 0
        %v921 = vsel %vm593, %v902, 0
        %v924 = vsel %vm593, %v903, 0
        %926 = vmatpush.msra.mxu0 0.0
        %927 = vmatpush.msra.mxu0 0.0
        %928 = vmatpush.msra.mxu0 0.0
        %929 = vmatpush.msra.mxu0 0.0
        %930 = vmatpush.msra.mxu0 %v916
        %931 = vmatpush.msra.mxu0 %v915
        %932 = vmatpush.msra.mxu0 %v914
        %933 = vmatpush.msra.mxu0 %v913
        %934 = vmatpush.msra.mxu0 %v912
        %935 = vmatpush.msra.mxu0 %v911
        %936 = vmatpush.msra.mxu0 %v910
        %937 = vmatpush.msra.mxu0 %v909
        %938 = vmatpush.msra.mxu0 %v908
        %939 = vmatpush.msra.mxu0 %v907
        %940 = vmatpush.msra.mxu0 %v906
        %941 = vmatpush.msra.mxu0 %v905
        %942 = vmatmul.f32.gmra.mxu0 %v918
        %v943 = vpop.f32.mrf.mxu0
        %v944 = vadd.f32 0.0, %v943
        %945 = vmatmul.f32.gmra.mxu0 %v921
        %v946 = vpop.f32.mrf.mxu0
        %v947 = vadd.f32 0.0, %v946
        %948 = vmatmul.f32.gmra.mxu0 %v924
        %v949 = vpop.f32.mrf.mxu0
        %v950 = vadd.f32 0.0, %v949
        %951 = vdwg.mxu0
        %v952 = vadd.f32 %v863, %v944
        %v953 = vadd.f32 %v863, %v947
        %v954 = vadd.f32 %v863, %v950
        %v958 = vrot.slane %v952, 1
        %v959 = vrot.slane %v953, 1
        %v960 = vsel %vm663, %v958, %v959
        %v961 = vrot.slane %v954, 1
        %v962 = vsel %vm663, %v959, %v961
        %v967 = vsel %vm653, %v958, 0.0
        %v968 = vsel %vm654, %v960, 0.0
        %v969 = vsel %vm655, %v962, 0.0
        %v970 = vsel %vm656, %v961, 0.0
        %vm971 = vcmp.ge.f32.partialorder %v967, 0.0
        %vm972 = vcmp.ge.f32.partialorder %v968, 0.0
        %vm973 = vcmp.ge.f32.partialorder %v969, 0.0
        %vm974 = vcmp.ge.f32.partialorder %v970, 0.0
        %v975 = vmul.f32 %v967, 0.1
        %v976 = vmul.f32 %v968, 0.1
        %v977 = vmul.f32 %v969, 0.1
        %v978 = vmul.f32 %v970, 0.1
        %v979 = vsel %vm971, %v967, %v975
        %v980 = vsel %vm972, %v968, %v976
        %v981 = vsel %vm973, %v969, %v977
        %v982 = vsel %vm974, %v970, %v978
        %983 = vst.msk [vmem:[#allocation3 - $0x7] sm:$0x80] %vm703, %v979
        %984 = vst.msk [vmem:[#allocation3 + $0x1] sm:$0xff] %vm430, %v980
        %985 = vst.msk [vmem:[#allocation3 + $0x9] sm:$0xff] %vm430, %v981
        %986 = vst.msk [vmem:[#allocation3 + $0x11] sm:$0x1] %vm709, %v982
        %v987 = vld [vmem:[#allocation2 + $0x10] sm:$0xff]
        %v988 = vld [vmem:[#allocation2 + $0x18] sm:$0xff]
        %s989 = scalar_lea.vmem %s6, 1
        %v990 = vld [vmem:[%s989] sm:$0x1]
        %v992 = vperm.slane %v990, 0
        %v994 = vadd.f32 %v987, %v992
        %v995 = vadd.f32 %v988, %v992
        %v996 = vld [vmem:[#allocation3] sm:$0xff]
        %v997 = vld [vmem:[#allocation3 + $0x8] sm:$0xff]
        %v998 = vld [vmem:[#allocation3 + $0x1] sm:$0xff]
        %v999 = vld [vmem:[#allocation3 + $0x9] sm:$0xff]
        %v1000 = vld [vmem:[#allocation3 + $0x2] sm:$0xff]
        %v1001 = vld [vmem:[#allocation3 + $0xa] sm:$0xff]
        %1004 = vrot.lane.b32.xlu0 %v998, 32
        %v1005 = vpop.permute.xlu0 %1004
        %1006 = vrot.lane.b32.xlu0 %v999, 32
        %v1007 = vpop.permute.xlu0 %1006
        %1012 = vrot.lane.b32.xlu0 %v1000, 64
        %v1013 = vpop.permute.xlu0 %1012
        %1014 = vrot.lane.b32.xlu0 %v1001, 64
        %v1015 = vpop.permute.xlu0 %1014
        %v1018 = vsel %vm430, %v996, %v1005
        %v1019 = vsel %vm430, %v997, %v1007
        %v1020 = vsel %vm575, %v1018, %v1013
        %v1021 = vsel %vm575, %v1019, %v1015
        %s1022 = scalar_lea.vmem %s5, 96
        %v1023 = vld [vmem:[%s1022] sm:$0xff]
        %v1024 = vld [vmem:[%s1022 + $0x8] sm:$0xff]
        %v1025 = vld [vmem:[%s1022 + $0x10] sm:$0xff]
        %v1026 = vld [vmem:[%s1022 + $0x18] sm:$0xff]
        %v1027 = vld [vmem:[%s1022 + $0x20] sm:$0xff]
        %v1028 = vld [vmem:[%s1022 + $0x28] sm:$0xff]
        %v1029 = vld [vmem:[%s1022 + $0x30] sm:$0xff]
        %v1030 = vld [vmem:[%s1022 + $0x38] sm:$0xff]
        %v1031 = vld [vmem:[%s1022 + $0x40] sm:$0xff]
        %v1032 = vld [vmem:[%s1022 + $0x48] sm:$0xff]
        %v1033 = vld [vmem:[%s1022 + $0x50] sm:$0xff]
        %v1034 = vld [vmem:[%s1022 + $0x58] sm:$0xff]
        %v1036 = vsel %vm593, %v1020, 0
        %v1039 = vsel %vm593, %v1021, 0
        %1041 = vmatpush.msra.mxu0 0.0
        %1042 = vmatpush.msra.mxu0 0.0
        %1043 = vmatpush.msra.mxu0 0.0
        %1044 = vmatpush.msra.mxu0 0.0
        %1045 = vmatpush.msra.mxu0 %v1034
        %1046 = vmatpush.msra.mxu0 %v1033
        %1047 = vmatpush.msra.mxu0 %v1032
        %1048 = vmatpush.msra.mxu0 %v1031
        %1049 = vmatpush.msra.mxu0 %v1030
        %1050 = vmatpush.msra.mxu0 %v1029
        %1051 = vmatpush.msra.mxu0 %v1028
        %1052 = vmatpush.msra.mxu0 %v1027
        %1053 = vmatpush.msra.mxu0 %v1026
        %1054 = vmatpush.msra.mxu0 %v1025
        %1055 = vmatpush.msra.mxu0 %v1024
        %1056 = vmatpush.msra.mxu0 %v1023
        %1057 = vmatmul.f32.gmra.mxu0 %v1036
        %v1058 = vpop.f32.mrf.mxu0
        %v1059 = vadd.f32 0.0, %v1058
        %1060 = vmatmul.f32.gmra.mxu0 %v1039
        %v1061 = vpop.f32.mrf.mxu0
        %v1062 = vadd.f32 0.0, %v1061
        %1063 = vdwg.mxu0
        %v1064 = vadd.f32 %v994, %v1059
        %v1065 = vadd.f32 %v995, %v1062
        %1066 = vst.msk [vmem:[%s378] sm:$0xff] %vm430, %v1064
        %1067 = vst.msk [vmem:[%s378 + $0x8] sm:$0xff] %vm430, %v1065
        %s1068 = sand.u32 %s223, 1
        %s1069 = scalar_lea.sflag [#allocation5], %s1068
        %s1070 = sand.u32 %s223, 1
        %s1071 = smul.addr %s1070, 16
        %s1072 = scalar_lea.vmem [#allocation4], %s1071
        // Predicated region
        $region49: #{tpu_custom_call.1} parent=47 // pred_check
          %p1073 = pneg %p233
        $region50: #{tpu_custom_call.1} parent=47 // pred_check_branch
          %1075 = sbr.rel (%p1073) target = $region52
        $region51: #{tpu_custom_call.1} parent=47 // pred_region
          %s1076 = smul.u32 2, %s26
          %1078 = vsyncadd %s1069, 0
          %s1079 = smul.addr %s25, 2
          %s1080 = sadd.s32 %s1076, %s1079
          %s1081 = smul.addr %s1080, 8
          %s1082 = scalar_lea.hbm %s7, %s1081
          %s1083 = sshll.u32 %s1072, 4
          %s1084 = int_to_ptr.vmem [resolvable:$true] %s1083
          %s1085 = sshll.u32 %s1082, 4
          %s1086 = int_to_ptr.hbm [resolvable:$true] %s1085
          %1091 = dma.vmem_to_hbm [thread:$0]  %s1084, 256, %s1086, %s1069, 128, 128, 8
        $region52: #{tpu_custom_call.1} parent=47 // pred_fallthru
          _
      $region48: #{tpu_custom_call.1} parent=5 // pred_fallthru
        _
      %p1092 = scmp.le.s32.totalorder 2, %s16
      // Predicated region
      $region53: #{tpu_custom_call.1} parent=5 // pred_check
        %p1093 = pneg %p1092
      $region54: #{tpu_custom_call.1} parent=5 // pred_check_branch
        %1095 = sbr.rel (%p1093) target = $region56
      $region55: #{tpu_custom_call.1} parent=5 // pred_region
        %s1096 = ssub.s32 %s16, 2
        // Predicated region
        $region57: #{tpu_custom_call.1} parent=55 // pred_check
          %p1097 = pneg %p239
        $region58: #{tpu_custom_call.1} parent=55 // pred_check_branch
          %1099 = sbr.rel (%p1097) target = $region60
        $region59: #{tpu_custom_call.1} parent=55 // pred_region
          %s1100 = sand.u32 %s224, 1
          %s1101 = scalar_lea.sflag [#allocation5], %s1100
          %s1102 = sand.u32 %s224, 1
          %s1103 = smul.addr %s1102, 16
          %s1104 = scalar_lea.vmem [#allocation4], %s1103
          %1106 = dma.done %s1101, 256
        $region60: #{tpu_custom_call.1} parent=55 // pred_fallthru
          _
      $region56: #{tpu_custom_call.1} parent=5 // pred_fallthru
        _
    $region6: #{tpu_custom_call.1} parent=1 // loop_footer
      %s20 = sadd.s32 1, %s16
    $region7: #{tpu_custom_call.1} parent=1 // loop_footer_branch
      %15 = sbr.rel target = $region3
    $region8: #{tpu_custom_call.1} parent=1 // loop_exit
      _
    %1107 = vsyncpa [#allocation5], 1
    %s1108 = scalar_lea.sflag [#allocation5], 1
    %1109 = vsyncpa %s1108, 1

</llo_original>
